<compile_context>
chip_gen: v7x
topology: tpu7x:2x2x1
jax: 0.10.0
libtpu: 0.0.40
codegen_flags: <defaults>
</compile_context>

<pallas_src>
import jax
import jax.numpy as jnp
import numpy as np
from jax import lax
from jax.experimental import pallas as pl
from jax.experimental.pallas import tpu as pltpu


def _round_up(v, m):
    return (v + m - 1) // m * m


# ---------------------------------------------------------------------------
# Kernel
# ---------------------------------------------------------------------------
def _lstm_kernel(x_ref, wih_ref, whh_ref, b_ref, wlin_ref, blin_ref, out_ref,
                 pre_ref):
    """LSTM recurrence (unrolled over T) + linear head, all in VMEM.

    x_ref    : (T, Bp, 1)   f32  time-major input, batch padded to 8 sublanes
    wih_ref  : (1, 4*Hp)    f32  input->gates row (per-gate 128-lane slabs, zero-padded)
    whh_ref  : (Hp, 4*Hp)   bf16 hidden->gates weights (padded rows/cols are zero)
    b_ref    : (1, 4*Hp)    f32  combined bias b_ih + b_hh (padded lanes zero)
    wlin_ref : (1, Hp)      f32  linear head weights (padded lanes zero)
    blin_ref : (1, 1)       f32  linear head bias
    out_ref  : (Bp, 1)      f32  output = Linear(h_T)
    pre_ref  : (T, Bp, 4Hp) f32  VMEM scratch: hoisted input projection
    """
    T, Bp, _ = x_ref.shape          # input_size == 1 (module default)
    Hp = whh_ref.shape[0]           # per-gate lane-padded hidden size (128)

    # --- Hoisted input projection (independent of h/c): one vectorized pass
    # over all T instead of T per-step lane-1 broadcasts inside the recurrence.
    pre_ref[...] = x_ref[...] * wih_ref[...] + b_ref[...]       # (T, Bp, 4Hp)

    whh = whh_ref[...]              # (Hp, 4Hp) bf16, loop-invariant MXU RHS
    h0 = jnp.zeros((Bp, Hp), jnp.float32)
    c0 = jnp.zeros((Bp, Hp), jnp.float32)

    def sigmoid(z):
        # One EUP push (tanh) instead of exp + divide.
        return 0.5 * jnp.tanh(0.5 * z) + 0.5

    def step(t, carry):
        h, c = carry
        # The only op on the recurrent critical path: one aligned bf16 MXU
        # matmul with f32 accumulation.  (Raw MXU staging-register driving was
        # considered per review but kept on jnp.dot for portability.)
        gates = pre_ref[t] + jnp.dot(h.astype(jnp.bfloat16), whh,
                                     preferred_element_type=jnp.float32)
        # Lane-aligned gate slices (each gate occupies its own 128-lane slab).
        i_g = sigmoid(gates[:, 0 * Hp:1 * Hp])
        f_g = sigmoid(gates[:, 1 * Hp:2 * Hp])
        g_g = jnp.tanh(gates[:, 2 * Hp:3 * Hp])
        o_g = sigmoid(gates[:, 3 * Hp:4 * Hp])
        c_new = f_g * c + i_g * g_g
        h_new = o_g * jnp.tanh(c_new)
        return h_new, c_new

    # T is a compile-time constant; fully unroll so independent work overlaps.
    h_T, _ = lax.fori_loop(0, T, step, (h0, c0), unroll=True)

    # Linear head (Hp -> 1): broadcast multiply + lane reduction (VPU/XLU)
    # instead of a wasteful N=1 MXU matmul.  Padded lanes of h_T / wlin are 0.
    out_ref[...] = (
        jnp.sum(h_T * wlin_ref[...], axis=-1, keepdims=True) + blin_ref[...]
    )


# ---------------------------------------------------------------------------
# One-time parameter preparation (hoisted out of the per-call wrapper)
# ---------------------------------------------------------------------------
def prepare_params(w_ih, w_hh, b_ih, b_hh, w_lin, b_lin, *, lane=128):
    """Transpose / pad / cast weights once: each gate gets its own 128-lane slab.

    whh is stored as bf16 (MXU-native on v5e/v6e/v7x, f32 accumulation); all
    other parameters and the gate math remain f32.
    """
    four_h, H = w_hh.shape
    assert four_h == 4 * H
    assert w_ih.shape[1] == 1, "kernel assumes input_size == 1 (module default)"
    Hp = max(_round_up(H, lane), lane)

    def pad_gate_cols(w):
        # (..., 4H) -> (..., 4*Hp), gate g placed at columns [g*Hp, g*Hp+H).
        slabs = []
        for g in range(4):
            slab = w[..., g * H:(g + 1) * H]
            pad = [(0, 0)] * (w.ndim - 1) + [(0, Hp - H)]
            slabs.append(jnp.pad(slab, pad))
        return jnp.concatenate(slabs, axis=-1)

    wih_t = pad_gate_cols(jnp.transpose(w_ih).astype(jnp.float32))       # (1, 4Hp) f32
    whh_t = pad_gate_cols(jnp.transpose(w_hh).astype(jnp.float32))       # (H, 4Hp)
    whh_t = jnp.pad(whh_t, ((0, Hp - H), (0, 0)))                        # (Hp, 4Hp)
    whh_t = whh_t.astype(jnp.bfloat16)                                   # bf16 MXU RHS
    b_all = pad_gate_cols((b_ih + b_hh).astype(jnp.float32)[None, :])    # (1, 4Hp) f32
    wlin_t = jnp.pad(w_lin.astype(jnp.float32), ((0, 0), (0, Hp - H)))   # (1, Hp) f32
    blin = b_lin.astype(jnp.float32).reshape(1, 1)                       # (1, 1)
    return {"wih": wih_t, "whh": whh_t, "b": b_all, "wlin": wlin_t, "blin": blin}


# ---------------------------------------------------------------------------
# Forward wrapper
# ---------------------------------------------------------------------------
@jax.jit
def lstm_forward(x_btI, params):
    """x_btI: (B, T, 1) float32, batch_first (PyTorch convention) -> (B, 1)."""
    B, T, I = x_btI.shape
    assert I == 1
    Hp = params["whh"].shape[0]
    Bp = max(_round_up(B, 8), 8)

    x = jnp.asarray(x_btI, jnp.float32)
    x = jnp.pad(x, ((0, Bp - B), (0, 0), (0, 0)))       # pad batch to 8 sublanes
    x = jnp.transpose(x, (1, 0, 2))                     # time-major (T, Bp, 1)

    vmem = pl.BlockSpec(memory_space=pltpu.MemorySpace.VMEM)
    out_p = pl.pallas_call(
        _lstm_kernel,
        out_shape=jax.ShapeDtypeStruct((Bp, 1), jnp.float32),
        in_specs=[vmem] * 6,
        out_specs=vmem,
        scratch_shapes=[pltpu.VMEM((T, Bp, 4 * Hp), jnp.float32)],  # pre_all
    )(x, params["wih"], params["whh"], params["b"], params["wlin"], params["blin"])
    return out_p[:B]


# ---------------------------------------------------------------------------
# Pure-JAX reference mirroring PyTorch nn.LSTM + nn.Linear (full f32)
# ---------------------------------------------------------------------------
def _reference_forward(x_btI, w_ih, w_hh, b_ih, b_hh, w_lin, b_lin):
    B, T, I = x_btI.shape
    H = w_hh.shape[1]
    h = jnp.zeros((B, H), jnp.float32)
    c = jnp.zeros((B, H), jnp.float32)
    for t in range(T):
        gates = x_btI[:, t, :] @ w_ih.T + h @ w_hh.T + b_ih + b_hh
        i_g = jax.nn.sigmoid(gates[:, 0 * H:1 * H])
        f_g = jax.nn.sigmoid(gates[:, 1 * H:2 * H])
        g_g = jnp.tanh(gates[:, 2 * H:3 * H])
        o_g = jax.nn.sigmoid(gates[:, 3 * H:4 * H])
        c = f_g * c + i_g * g_g
        h = o_g * jnp.tanh(c)
    return h @ w_lin.T + b_lin


if __name__ == "__main__":
    # Module hyperparameters (from __init__ defaults) + small example shapes.
    INPUT_SIZE = 1
    HIDDEN = 50
    B, T = 2, 8

    key = jax.random.PRNGKey(0)
    k_x, k_wih, k_whh, k_bih, k_bhh, k_wl, k_bl = jax.random.split(key, 7)

    bound = 1.0 / np.sqrt(HIDDEN)  # PyTorch default init range
    x = jax.random.normal(k_x, (B, T, INPUT_SIZE), dtype=jnp.float32)
    w_ih = jax.random.uniform(k_wih, (4 * HIDDEN, INPUT_SIZE), jnp.float32, -bound, bound)
    w_hh = jax.random.uniform(k_whh, (4 * HIDDEN, HIDDEN), jnp.float32, -bound, bound)
    b_ih = jax.random.uniform(k_bih, (4 * HIDDEN,), jnp.float32, -bound, bound)
    b_hh = jax.random.uniform(k_bhh, (4 * HIDDEN,), jnp.float32, -bound, bound)
    w_lin = jax.random.uniform(k_wl, (1, HIDDEN), jnp.float32, -bound, bound)
    b_lin = jax.random.uniform(k_bl, (1,), jnp.float32, -bound, bound)

    # One-time weight layout / dtype prep (cached & device-resident across calls).
    params = prepare_params(w_ih, w_hh, b_ih, b_hh, w_lin, b_lin)

    out = lstm_forward(x, params)
    out = jax.block_until_ready(out)

    ref = _reference_forward(x, w_ih, w_hh, b_ih, b_hh, w_lin, b_lin)
    assert out.shape == (B, 1)
    # Tolerance reflects the bf16 recurrent matmul (f32 accumulation); the
    # full-f32 PyTorch-faithful reference stays the semantic spec.
    np.testing.assert_allclose(np.asarray(out), np.asarray(ref), rtol=2e-2, atol=2e-2)

    print("KERNEL_OK")
</pallas_src>

<mosaic_0001>
module attributes {stable_mosaic.version = 11 : i64} {
  func.func @_lstm_kernel(%arg0: memref<8x8x1xf32, #tpu.memory_space<vmem>>, %arg1: memref<1x512xf32, #tpu.memory_space<vmem>>, %arg2: memref<128x512xbf16, #tpu.memory_space<vmem>>, %arg3: memref<1x512xf32, #tpu.memory_space<vmem>>, %arg4: memref<1x128xf32, #tpu.memory_space<vmem>>, %arg5: memref<1x1xf32, #tpu.memory_space<vmem>>, %arg6: memref<8x1xf32, #tpu.memory_space<vmem>>, %arg7: memref<8x8x512xf32, #tpu.memory_space<vmem>>) attributes {dimension_semantics = [], scalar_prefetch = 0 : i64, scratch_operands = 1 : i64, tpu.core_type = #tpu.core_type<tc>} {
    %c0 = arith.constant 0 : index
    %c0_0 = arith.constant 0 : index
    %c0_1 = arith.constant 0 : index
    %0 = vector.load %arg0[%c0, %c0_0, %c0_1] : memref<8x8x1xf32, #tpu.memory_space<vmem>>, vector<8x8x1xf32>
    %c0_2 = arith.constant 0 : index
    %c0_3 = arith.constant 0 : index
    %1 = vector.load %arg1[%c0_2, %c0_3] : memref<1x512xf32, #tpu.memory_space<vmem>>, vector<1x512xf32>
    %2 = vector.shape_cast %1 : vector<1x512xf32> to vector<1x1x512xf32>
    %3 = vector.broadcast %0 : vector<8x8x1xf32> to vector<8x8x512xf32>
    %4 = vector.broadcast %2 : vector<1x1x512xf32> to vector<8x8x512xf32>
    %5 = arith.mulf %3, %4 : vector<8x8x512xf32>
    %c0_4 = arith.constant 0 : index
    %c0_5 = arith.constant 0 : index
    %6 = vector.load %arg3[%c0_4, %c0_5] : memref<1x512xf32, #tpu.memory_space<vmem>>, vector<1x512xf32>
    %7 = vector.shape_cast %6 : vector<1x512xf32> to vector<1x1x512xf32>
    %8 = vector.broadcast %7 : vector<1x1x512xf32> to vector<8x8x512xf32>
    %9 = arith.addf %5, %8 : vector<8x8x512xf32>
    %c0_6 = arith.constant 0 : index
    %c0_7 = arith.constant 0 : index
    %c0_8 = arith.constant 0 : index
    %10 = vector.load %arg7[%c0_6, %c0_7, %c0_8] : memref<8x8x512xf32, #tpu.memory_space<vmem>>, vector<8x8x512xf32>
    tpu.vector_store %arg7[%c0_6, %c0_7, %c0_8], %9 {strides = array<i32>} : memref<8x8x512xf32, #tpu.memory_space<vmem>>, vector<8x8x512xf32>,
    %c0_9 = arith.constant 0 : index
    %c0_10 = arith.constant 0 : index
    %11 = vector.load %arg2[%c0_9, %c0_10] : memref<128x512xbf16, #tpu.memory_space<vmem>>, vector<128x512xbf16>
    %cst = arith.constant 0.000000e+00 : f32
    %12 = vector.broadcast %cst : f32 to vector<8x128xf32>
    %cst_11 = arith.constant 0.000000e+00 : f32
    %13 = vector.broadcast %cst_11 : f32 to vector<8x128xf32>
    %c0_i32 = arith.constant 0 : i32
    %14 = arith.index_cast %c0_i32 : i32 to index
    %c0_12 = arith.constant 0 : index
    %c0_13 = arith.constant 0 : index
    %15 = vector.load %arg7[%14, %c0_12, %c0_13] : memref<8x8x512xf32, #tpu.memory_space<vmem>>, vector<1x8x512xf32>
    %16 = vector.shape_cast %15 : vector<1x8x512xf32> to vector<8x512xf32>
    %17 = arith.truncf %12 : vector<8x128xf32> to vector<8x128xbf16>
    %cst_14 = arith.constant dense<0.000000e+00> : vector<8x512xf32>
    %18 = tpu.matmul %17, %11, %cst_14 {dimension_numbers = #tpu.dot_dimension_numbers<[1], [0], [0], [1], [0, 0, 1, 1], [], []>} : vector<8x128xbf16>, vector<128x512xbf16>, vector<8x512xf32> -> vector<8x512xf32>
    %19 = arith.addf %16, %18 : vector<8x512xf32>
    %20 = vector.extract_strided_slice %19 {offsets = [0, 0], sizes = [8, 128], strides = [1, 1]} : vector<8x512xf32> to vector<8x128xf32>
    %cst_15 = arith.constant 5.000000e-01 : f32
    %21 = vector.broadcast %cst_15 : f32 to vector<8x128xf32>
    %22 = arith.mulf %21, %20 : vector<8x128xf32>
    %23 = math.tanh %22 : vector<8x128xf32>
    %cst_16 = arith.constant 5.000000e-01 : f32
    %24 = vector.broadcast %cst_16 : f32 to vector<8x128xf32>
    %25 = arith.mulf %24, %23 : vector<8x128xf32>
    %cst_17 = arith.constant 5.000000e-01 : f32
    %26 = vector.broadcast %cst_17 : f32 to vector<8x128xf32>
    %27 = arith.addf %25, %26 : vector<8x128xf32>
    %28 = vector.extract_strided_slice %19 {offsets = [0, 128], sizes = [8, 128], strides = [1, 1]} : vector<8x512xf32> to vector<8x128xf32>
    %cst_18 = arith.constant 5.000000e-01 : f32
    %29 = vector.broadcast %cst_18 : f32 to vector<8x128xf32>
    %30 = arith.mulf %29, %28 : vector<8x128xf32>
    %31 = math.tanh %30 : vector<8x128xf32>
    %cst_19 = arith.constant 5.000000e-01 : f32
    %32 = vector.broadcast %cst_19 : f32 to vector<8x128xf32>
    %33 = arith.mulf %32, %31 : vector<8x128xf32>
    %cst_20 = arith.constant 5.000000e-01 : f32
    %34 = vector.broadcast %cst_20 : f32 to vector<8x128xf32>
    %35 = arith.addf %33, %34 : vector<8x128xf32>
    %36 = vector.extract_strided_slice %19 {offsets = [0, 256], sizes = [8, 128], strides = [1, 1]} : vector<8x512xf32> to vector<8x128xf32>
    %37 = math.tanh %36 : vector<8x128xf32>
    %38 = vector.extract_strided_slice %19 {offsets = [0, 384], sizes = [8, 128], strides = [1, 1]} : vector<8x512xf32> to vector<8x128xf32>
    %cst_21 = arith.constant 5.000000e-01 : f32
    %39 = vector.broadcast %cst_21 : f32 to vector<8x128xf32>
    %40 = arith.mulf %39, %38 : vector<8x128xf32>
    %41 = math.tanh %40 : vector<8x128xf32>
    %cst_22 = arith.constant 5.000000e-01 : f32
    %42 = vector.broadcast %cst_22 : f32 to vector<8x128xf32>
    %43 = arith.mulf %42, %41 : vector<8x128xf32>
    %cst_23 = arith.constant 5.000000e-01 : f32
    %44 = vector.broadcast %cst_23 : f32 to vector<8x128xf32>
    %45 = arith.addf %43, %44 : vector<8x128xf32>
    %46 = arith.mulf %35, %13 : vector<8x128xf32>
    %47 = arith.mulf %27, %37 : vector<8x128xf32>
    %48 = arith.addf %46, %47 : vector<8x128xf32>
    %49 = math.tanh %48 : vector<8x128xf32>
    %50 = arith.mulf %45, %49 : vector<8x128xf32>
    %c1_i32 = arith.constant 1 : i32
    %51 = arith.index_cast %c1_i32 : i32 to index
    %c0_24 = arith.constant 0 : index
    %c0_25 = arith.constant 0 : index
    %52 = vector.load %arg7[%51, %c0_24, %c0_25] : memref<8x8x512xf32, #tpu.memory_space<vmem>>, vector<1x8x512xf32>
    %53 = vector.shape_cast %52 : vector<1x8x512xf32> to vector<8x512xf32>
    %54 = arith.truncf %50 : vector<8x128xf32> to vector<8x128xbf16>
    %cst_26 = arith.constant dense<0.000000e+00> : vector<8x512xf32>
    %55 = tpu.matmul %54, %11, %cst_26 {dimension_numbers = #tpu.dot_dimension_numbers<[1], [0], [0], [1], [0, 0, 1, 1], [], []>} : vector<8x128xbf16>, vector<128x512xbf16>, vector<8x512xf32> -> vector<8x512xf32>
    %56 = arith.addf %53, %55 : vector<8x512xf32>
    %57 = vector.extract_strided_slice %56 {offsets = [0, 0], sizes = [8, 128], strides = [1, 1]} : vector<8x512xf32> to vector<8x128xf32>
    %cst_27 = arith.constant 5.000000e-01 : f32
    %58 = vector.broadcast %cst_27 : f32 to vector<8x128xf32>
    %59 = arith.mulf %58, %57 : vector<8x128xf32>
    %60 = math.tanh %59 : vector<8x128xf32>
    %cst_28 = arith.constant 5.000000e-01 : f32
    %61 = vector.broadcast %cst_28 : f32 to vector<8x128xf32>
    %62 = arith.mulf %61, %60 : vector<8x128xf32>
    %cst_29 = arith.constant 5.000000e-01 : f32
    %63 = vector.broadcast %cst_29 : f32 to vector<8x128xf32>
    %64 = arith.addf %62, %63 : vector<8x128xf32>
    %65 = vector.extract_strided_slice %56 {offsets = [0, 128], sizes = [8, 128], strides = [1, 1]} : vector<8x512xf32> to vector<8x128xf32>
    %cst_30 = arith.constant 5.000000e-01 : f32
    %66 = vector.broadcast %cst_30 : f32 to vector<8x128xf32>
    %67 = arith.mulf %66, %65 : vector<8x128xf32>
    %68 = math.tanh %67 : vector<8x128xf32>
    %cst_31 = arith.constant 5.000000e-01 : f32
    %69 = vector.broadcast %cst_31 : f32 to vector<8x128xf32>
    %70 = arith.mulf %69, %68 : vector<8x128xf32>
    %cst_32 = arith.constant 5.000000e-01 : f32
    %71 = vector.broadcast %cst_32 : f32 to vector<8x128xf32>
    %72 = arith.addf %70, %71 : vector<8x128xf32>
    %73 = vector.extract_strided_slice %56 {offsets = [0, 256], sizes = [8, 128], strides = [1, 1]} : vector<8x512xf32> to vector<8x128xf32>
    %74 = math.tanh %73 : vector<8x128xf32>
    %75 = vector.extract_strided_slice %56 {offsets = [0, 384], sizes = [8, 128], strides = [1, 1]} : vector<8x512xf32> to vector<8x128xf32>
    %cst_33 = arith.constant 5.000000e-01 : f32
    %76 = vector.broadcast %cst_33 : f32 to vector<8x128xf32>
    %77 = arith.mulf %76, %75 : vector<8x128xf32>
    %78 = math.tanh %77 : vector<8x128xf32>
    %cst_34 = arith.constant 5.000000e-01 : f32
    %79 = vector.broadcast %cst_34 : f32 to vector<8x128xf32>
    %80 = arith.mulf %79, %78 : vector<8x128xf32>
    %cst_35 = arith.constant 5.000000e-01 : f32
    %81 = vector.broadcast %cst_35 : f32 to vector<8x128xf32>
    %82 = arith.addf %80, %81 : vector<8x128xf32>
    %83 = arith.mulf %72, %48 : vector<8x128xf32>
    %84 = arith.mulf %64, %74 : vector<8x128xf32>
    %85 = arith.addf %83, %84 : vector<8x128xf32>
    %86 = math.tanh %85 : vector<8x128xf32>
    %87 = arith.mulf %82, %86 : vector<8x128xf32>
    %c2_i32 = arith.constant 2 : i32
    %88 = arith.index_cast %c2_i32 : i32 to index
    %c0_36 = arith.constant 0 : index
    %c0_37 = arith.constant 0 : index
    %89 = vector.load %arg7[%88, %c0_36, %c0_37] : memref<8x8x512xf32, #tpu.memory_space<vmem>>, vector<1x8x512xf32>
    %90 = vector.shape_cast %89 : vector<1x8x512xf32> to vector<8x512xf32>
    %91 = arith.truncf %87 : vector<8x128xf32> to vector<8x128xbf16>
    %cst_38 = arith.constant dense<0.000000e+00> : vector<8x512xf32>
    %92 = tpu.matmul %91, %11, %cst_38 {dimension_numbers = #tpu.dot_dimension_numbers<[1], [0], [0], [1], [0, 0, 1, 1], [], []>} : vector<8x128xbf16>, vector<128x512xbf16>, vector<8x512xf32> -> vector<8x512xf32>
    %93 = arith.addf %90, %92 : vector<8x512xf32>
    %94 = vector.extract_strided_slice %93 {offsets = [0, 0], sizes = [8, 128], strides = [1, 1]} : vector<8x512xf32> to vector<8x128xf32>
    %cst_39 = arith.constant 5.000000e-01 : f32
    %95 = vector.broadcast %cst_39 : f32 to vector<8x128xf32>
    %96 = arith.mulf %95, %94 : vector<8x128xf32>
    %97 = math.tanh %96 : vector<8x128xf32>
    %cst_40 = arith.constant 5.000000e-01 : f32
    %98 = vector.broadcast %cst_40 : f32 to vector<8x128xf32>
    %99 = arith.mulf %98, %97 : vector<8x128xf32>
    %cst_41 = arith.constant 5.000000e-01 : f32
    %100 = vector.broadcast %cst_41 : f32 to vector<8x128xf32>
    %101 = arith.addf %99, %100 : vector<8x128xf32>
    %102 = vector.extract_strided_slice %93 {offsets = [0, 128], sizes = [8, 128], strides = [1, 1]} : vector<8x512xf32> to vector<8x128xf32>
    %cst_42 = arith.constant 5.000000e-01 : f32
    %103 = vector.broadcast %cst_42 : f32 to vector<8x128xf32>
    %104 = arith.mulf %103, %102 : vector<8x128xf32>
    %105 = math.tanh %104 : vector<8x128xf32>
    %cst_43 = arith.constant 5.000000e-01 : f32
    %106 = vector.broadcast %cst_43 : f32 to vector<8x128xf32>
    %107 = arith.mulf %106, %105 : vector<8x128xf32>
    %cst_44 = arith.constant 5.000000e-01 : f32
    %108 = vector.broadcast %cst_44 : f32 to vector<8x128xf32>
    %109 = arith.addf %107, %108 : vector<8x128xf32>
    %110 = vector.extract_strided_slice %93 {offsets = [0, 256], sizes = [8, 128], strides = [1, 1]} : vector<8x512xf32> to vector<8x128xf32>
    %111 = math.tanh %110 : vector<8x128xf32>
    %112 = vector.extract_strided_slice %93 {offsets = [0, 384], sizes = [8, 128], strides = [1, 1]} : vector<8x512xf32> to vector<8x128xf32>
    %cst_45 = arith.constant 5.000000e-01 : f32
    %113 = vector.broadcast %cst_45 : f32 to vector<8x128xf32>
    %114 = arith.mulf %113, %112 : vector<8x128xf32>
    %115 = math.tanh %114 : vector<8x128xf32>
    %cst_46 = arith.constant 5.000000e-01 : f32
    %116 = vector.broadcast %cst_46 : f32 to vector<8x128xf32>
    %117 = arith.mulf %116, %115 : vector<8x128xf32>
    %cst_47 = arith.constant 5.000000e-01 : f32
    %118 = vector.broadcast %cst_47 : f32 to vector<8x128xf32>
    %119 = arith.addf %117, %118 : vector<8x128xf32>
    %120 = arith.mulf %109, %85 : vector<8x128xf32>
    %121 = arith.mulf %101, %111 : vector<8x128xf32>
    %122 = arith.addf %120, %121 : vector<8x128xf32>
    %123 = math.tanh %122 : vector<8x128xf32>
    %124 = arith.mulf %119, %123 : vector<8x128xf32>
    %c3_i32 = arith.constant 3 : i32
    %125 = arith.index_cast %c3_i32 : i32 to index
    %c0_48 = arith.constant 0 : index
    %c0_49 = arith.constant 0 : index
    %126 = vector.load %arg7[%125, %c0_48, %c0_49] : memref<8x8x512xf32, #tpu.memory_space<vmem>>, vector<1x8x512xf32>
    %127 = vector.shape_cast %126 : vector<1x8x512xf32> to vector<8x512xf32>
    %128 = arith.truncf %124 : vector<8x128xf32> to vector<8x128xbf16>
    %cst_50 = arith.constant dense<0.000000e+00> : vector<8x512xf32>
    %129 = tpu.matmul %128, %11, %cst_50 {dimension_numbers = #tpu.dot_dimension_numbers<[1], [0], [0], [1], [0, 0, 1, 1], [], []>} : vector<8x128xbf16>, vector<128x512xbf16>, vector<8x512xf32> -> vector<8x512xf32>
    %130 = arith.addf %127, %129 : vector<8x512xf32>
    %131 = vector.extract_strided_slice %130 {offsets = [0, 0], sizes = [8, 128], strides = [1, 1]} : vector<8x512xf32> to vector<8x128xf32>
    %cst_51 = arith.constant 5.000000e-01 : f32
    %132 = vector.broadcast %cst_51 : f32 to vector<8x128xf32>
    %133 = arith.mulf %132, %131 : vector<8x128xf32>
    %134 = math.tanh %133 : vector<8x128xf32>
    %cst_52 = arith.constant 5.000000e-01 : f32
    %135 = vector.broadcast %cst_52 : f32 to vector<8x128xf32>
    %136 = arith.mulf %135, %134 : vector<8x128xf32>
    %cst_53 = arith.constant 5.000000e-01 : f32
    %137 = vector.broadcast %cst_53 : f32 to vector<8x128xf32>
    %138 = arith.addf %136, %137 : vector<8x128xf32>
    %139 = vector.extract_strided_slice %130 {offsets = [0, 128], sizes = [8, 128], strides = [1, 1]} : vector<8x512xf32> to vector<8x128xf32>
    %cst_54 = arith.constant 5.000000e-01 : f32
    %140 = vector.broadcast %cst_54 : f32 to vector<8x128xf32>
    %141 = arith.mulf %140, %139 : vector<8x128xf32>
    %142 = math.tanh %141 : vector<8x128xf32>
    %cst_55 = arith.constant 5.000000e-01 : f32
    %143 = vector.broadcast %cst_55 : f32 to vector<8x128xf32>
    %144 = arith.mulf %143, %142 : vector<8x128xf32>
    %cst_56 = arith.constant 5.000000e-01 : f32
    %145 = vector.broadcast %cst_56 : f32 to vector<8x128xf32>
    %146 = arith.addf %144, %145 : vector<8x128xf32>
    %147 = vector.extract_strided_slice %130 {offsets = [0, 256], sizes = [8, 128], strides = [1, 1]} : vector<8x512xf32> to vector<8x128xf32>
    %148 = math.tanh %147 : vector<8x128xf32>
    %149 = vector.extract_strided_slice %130 {offsets = [0, 384], sizes = [8, 128], strides = [1, 1]} : vector<8x512xf32> to vector<8x128xf32>
    %cst_57 = arith.constant 5.000000e-01 : f32
    %150 = vector.broadcast %cst_57 : f32 to vector<8x128xf32>
    %151 = arith.mulf %150, %149 : vector<8x128xf32>
    %152 = math.tanh %151 : vector<8x128xf32>
    %cst_58 = arith.constant 5.000000e-01 : f32
    %153 = vector.broadcast %cst_58 : f32 to vector<8x128xf32>
    %154 = arith.mulf %153, %152 : vector<8x128xf32>
    %cst_59 = arith.constant 5.000000e-01 : f32
    %155 = vector.broadcast %cst_59 : f32 to vector<8x128xf32>
    %156 = arith.addf %154, %155 : vector<8x128xf32>
    %157 = arith.mulf %146, %122 : vector<8x128xf32>
    %158 = arith.mulf %138, %148 : vector<8x128xf32>
    %159 = arith.addf %157, %158 : vector<8x128xf32>
    %160 = math.tanh %159 : vector<8x128xf32>
    %161 = arith.mulf %156, %160 : vector<8x128xf32>
    %c4_i32 = arith.constant 4 : i32
    %162 = arith.index_cast %c4_i32 : i32 to index
    %c0_60 = arith.constant 0 : index
    %c0_61 = arith.constant 0 : index
    %163 = vector.load %arg7[%162, %c0_60, %c0_61] : memref<8x8x512xf32, #tpu.memory_space<vmem>>, vector<1x8x512xf32>
    %164 = vector.shape_cast %163 : vector<1x8x512xf32> to vector<8x512xf32>
    %165 = arith.truncf %161 : vector<8x128xf32> to vector<8x128xbf16>
    %cst_62 = arith.constant dense<0.000000e+00> : vector<8x512xf32>
    %166 = tpu.matmul %165, %11, %cst_62 {dimension_numbers = #tpu.dot_dimension_numbers<[1], [0], [0], [1], [0, 0, 1, 1], [], []>} : vector<8x128xbf16>, vector<128x512xbf16>, vector<8x512xf32> -> vector<8x512xf32>
    %167 = arith.addf %164, %166 : vector<8x512xf32>
    %168 = vector.extract_strided_slice %167 {offsets = [0, 0], sizes = [8, 128], strides = [1, 1]} : vector<8x512xf32> to vector<8x128xf32>
    %cst_63 = arith.constant 5.000000e-01 : f32
    %169 = vector.broadcast %cst_63 : f32 to vector<8x128xf32>
    %170 = arith.mulf %169, %168 : vector<8x128xf32>
    %171 = math.tanh %170 : vector<8x128xf32>
    %cst_64 = arith.constant 5.000000e-01 : f32
    %172 = vector.broadcast %cst_64 : f32 to vector<8x128xf32>
    %173 = arith.mulf %172, %171 : vector<8x128xf32>
    %cst_65 = arith.constant 5.000000e-01 : f32
    %174 = vector.broadcast %cst_65 : f32 to vector<8x128xf32>
    %175 = arith.addf %173, %174 : vector<8x128xf32>
    %176 = vector.extract_strided_slice %167 {offsets = [0, 128], sizes = [8, 128], strides = [1, 1]} : vector<8x512xf32> to vector<8x128xf32>
    %cst_66 = arith.constant 5.000000e-01 : f32
    %177 = vector.broadcast %cst_66 : f32 to vector<8x128xf32>
    %178 = arith.mulf %177, %176 : vector<8x128xf32>
    %179 = math.tanh %178 : vector<8x128xf32>
    %cst_67 = arith.constant 5.000000e-01 : f32
    %180 = vector.broadcast %cst_67 : f32 to vector<8x128xf32>
    %181 = arith.mulf %180, %179 : vector<8x128xf32>
    %cst_68 = arith.constant 5.000000e-01 : f32
    %182 = vector.broadcast %cst_68 : f32 to vector<8x128xf32>
    %183 = arith.addf %181, %182 : vector<8x128xf32>
    %184 = vector.extract_strided_slice %167 {offsets = [0, 256], sizes = [8, 128], strides = [1, 1]} : vector<8x512xf32> to vector<8x128xf32>
    %185 = math.tanh %184 : vector<8x128xf32>
    %186 = vector.extract_strided_slice %167 {offsets = [0, 384], sizes = [8, 128], strides = [1, 1]} : vector<8x512xf32> to vector<8x128xf32>
    %cst_69 = arith.constant 5.000000e-01 : f32
    %187 = vector.broadcast %cst_69 : f32 to vector<8x128xf32>
    %188 = arith.mulf %187, %186 : vector<8x128xf32>
    %189 = math.tanh %188 : vector<8x128xf32>
    %cst_70 = arith.constant 5.000000e-01 : f32
    %190 = vector.broadcast %cst_70 : f32 to vector<8x128xf32>
    %191 = arith.mulf %190, %189 : vector<8x128xf32>
    %cst_71 = arith.constant 5.000000e-01 : f32
    %192 = vector.broadcast %cst_71 : f32 to vector<8x128xf32>
    %193 = arith.addf %191, %192 : vector<8x128xf32>
    %194 = arith.mulf %183, %159 : vector<8x128xf32>
    %195 = arith.mulf %175, %185 : vector<8x128xf32>
    %196 = arith.addf %194, %195 : vector<8x128xf32>
    %197 = math.tanh %196 : vector<8x128xf32>
    %198 = arith.mulf %193, %197 : vector<8x128xf32>
    %c5_i32 = arith.constant 5 : i32
    %199 = arith.index_cast %c5_i32 : i32 to index
    %c0_72 = arith.constant 0 : index
    %c0_73 = arith.constant 0 : index
    %200 = vector.load %arg7[%199, %c0_72, %c0_73] : memref<8x8x512xf32, #tpu.memory_space<vmem>>, vector<1x8x512xf32>
    %201 = vector.shape_cast %200 : vector<1x8x512xf32> to vector<8x512xf32>
    %202 = arith.truncf %198 : vector<8x128xf32> to vector<8x128xbf16>
    %cst_74 = arith.constant dense<0.000000e+00> : vector<8x512xf32>
    %203 = tpu.matmul %202, %11, %cst_74 {dimension_numbers = #tpu.dot_dimension_numbers<[1], [0], [0], [1], [0, 0, 1, 1], [], []>} : vector<8x128xbf16>, vector<128x512xbf16>, vector<8x512xf32> -> vector<8x512xf32>
    %204 = arith.addf %201, %203 : vector<8x512xf32>
    %205 = vector.extract_strided_slice %204 {offsets = [0, 0], sizes = [8, 128], strides = [1, 1]} : vector<8x512xf32> to vector<8x128xf32>
    %cst_75 = arith.constant 5.000000e-01 : f32
    %206 = vector.broadcast %cst_75 : f32 to vector<8x128xf32>
    %207 = arith.mulf %206, %205 : vector<8x128xf32>
    %208 = math.tanh %207 : vector<8x128xf32>
    %cst_76 = arith.constant 5.000000e-01 : f32
    %209 = vector.broadcast %cst_76 : f32 to vector<8x128xf32>
    %210 = arith.mulf %209, %208 : vector<8x128xf32>
    %cst_77 = arith.constant 5.000000e-01 : f32
    %211 = vector.broadcast %cst_77 : f32 to vector<8x128xf32>
    %212 = arith.addf %210, %211 : vector<8x128xf32>
    %213 = vector.extract_strided_slice %204 {offsets = [0, 128], sizes = [8, 128], strides = [1, 1]} : vector<8x512xf32> to vector<8x128xf32>
    %cst_78 = arith.constant 5.000000e-01 : f32
    %214 = vector.broadcast %cst_78 : f32 to vector<8x128xf32>
    %215 = arith.mulf %214, %213 : vector<8x128xf32>
    %216 = math.tanh %215 : vector<8x128xf32>
    %cst_79 = arith.constant 5.000000e-01 : f32
    %217 = vector.broadcast %cst_79 : f32 to vector<8x128xf32>
    %218 = arith.mulf %217, %216 : vector<8x128xf32>
    %cst_80 = arith.constant 5.000000e-01 : f32
    %219 = vector.broadcast %cst_80 : f32 to vector<8x128xf32>
    %220 = arith.addf %218, %219 : vector<8x128xf32>
    %221 = vector.extract_strided_slice %204 {offsets = [0, 256], sizes = [8, 128], strides = [1, 1]} : vector<8x512xf32> to vector<8x128xf32>
    %222 = math.tanh %221 : vector<8x128xf32>
    %223 = vector.extract_strided_slice %204 {offsets = [0, 384], sizes = [8, 128], strides = [1, 1]} : vector<8x512xf32> to vector<8x128xf32>
    %cst_81 = arith.constant 5.000000e-01 : f32
    %224 = vector.broadcast %cst_81 : f32 to vector<8x128xf32>
    %225 = arith.mulf %224, %223 : vector<8x128xf32>
    %226 = math.tanh %225 : vector<8x128xf32>
    %cst_82 = arith.constant 5.000000e-01 : f32
    %227 = vector.broadcast %cst_82 : f32 to vector<8x128xf32>
    %228 = arith.mulf %227, %226 : vector<8x128xf32>
    %cst_83 = arith.constant 5.000000e-01 : f32
    %229 = vector.broadcast %cst_83 : f32 to vector<8x128xf32>
    %230 = arith.addf %228, %229 : vector<8x128xf32>
    %231 = arith.mulf %220, %196 : vector<8x128xf32>
    %232 = arith.mulf %212, %222 : vector<8x128xf32>
    %233 = arith.addf %231, %232 : vector<8x128xf32>
    %234 = math.tanh %233 : vector<8x128xf32>
    %235 = arith.mulf %230, %234 : vector<8x128xf32>
    %c6_i32 = arith.constant 6 : i32
    %236 = arith.index_cast %c6_i32 : i32 to index
    %c0_84 = arith.constant 0 : index
    %c0_85 = arith.constant 0 : index
    %237 = vector.load %arg7[%236, %c0_84, %c0_85] : memref<8x8x512xf32, #tpu.memory_space<vmem>>, vector<1x8x512xf32>
    %238 = vector.shape_cast %237 : vector<1x8x512xf32> to vector<8x512xf32>
    %239 = arith.truncf %235 : vector<8x128xf32> to vector<8x128xbf16>
    %cst_86 = arith.constant dense<0.000000e+00> : vector<8x512xf32>
    %240 = tpu.matmul %239, %11, %cst_86 {dimension_numbers = #tpu.dot_dimension_numbers<[1], [0], [0], [1], [0, 0, 1, 1], [], []>} : vector<8x128xbf16>, vector<128x512xbf16>, vector<8x512xf32> -> vector<8x512xf32>
    %241 = arith.addf %238, %240 : vector<8x512xf32>
    %242 = vector.extract_strided_slice %241 {offsets = [0, 0], sizes = [8, 128], strides = [1, 1]} : vector<8x512xf32> to vector<8x128xf32>
    %cst_87 = arith.constant 5.000000e-01 : f32
    %243 = vector.broadcast %cst_87 : f32 to vector<8x128xf32>
    %244 = arith.mulf %243, %242 : vector<8x128xf32>
    %245 = math.tanh %244 : vector<8x128xf32>
    %cst_88 = arith.constant 5.000000e-01 : f32
    %246 = vector.broadcast %cst_88 : f32 to vector<8x128xf32>
    %247 = arith.mulf %246, %245 : vector<8x128xf32>
    %cst_89 = arith.constant 5.000000e-01 : f32
    %248 = vector.broadcast %cst_89 : f32 to vector<8x128xf32>
    %249 = arith.addf %247, %248 : vector<8x128xf32>
    %250 = vector.extract_strided_slice %241 {offsets = [0, 128], sizes = [8, 128], strides = [1, 1]} : vector<8x512xf32> to vector<8x128xf32>
    %cst_90 = arith.constant 5.000000e-01 : f32
    %251 = vector.broadcast %cst_90 : f32 to vector<8x128xf32>
    %252 = arith.mulf %251, %250 : vector<8x128xf32>
    %253 = math.tanh %252 : vector<8x128xf32>
    %cst_91 = arith.constant 5.000000e-01 : f32
    %254 = vector.broadcast %cst_91 : f32 to vector<8x128xf32>
    %255 = arith.mulf %254, %253 : vector<8x128xf32>
    %cst_92 = arith.constant 5.000000e-01 : f32
    %256 = vector.broadcast %cst_92 : f32 to vector<8x128xf32>
    %257 = arith.addf %255, %256 : vector<8x128xf32>
    %258 = vector.extract_strided_slice %241 {offsets = [0, 256], sizes = [8, 128], strides = [1, 1]} : vector<8x512xf32> to vector<8x128xf32>
    %259 = math.tanh %258 : vector<8x128xf32>
    %260 = vector.extract_strided_slice %241 {offsets = [0, 384], sizes = [8, 128], strides = [1, 1]} : vector<8x512xf32> to vector<8x128xf32>
    %cst_93 = arith.constant 5.000000e-01 : f32
    %261 = vector.broadcast %cst_93 : f32 to vector<8x128xf32>
    %262 = arith.mulf %261, %260 : vector<8x128xf32>
    %263 = math.tanh %262 : vector<8x128xf32>
    %cst_94 = arith.constant 5.000000e-01 : f32
    %264 = vector.broadcast %cst_94 : f32 to vector<8x128xf32>
    %265 = arith.mulf %264, %263 : vector<8x128xf32>
    %cst_95 = arith.constant 5.000000e-01 : f32
    %266 = vector.broadcast %cst_95 : f32 to vector<8x128xf32>
    %267 = arith.addf %265, %266 : vector<8x128xf32>
    %268 = arith.mulf %257, %233 : vector<8x128xf32>
    %269 = arith.mulf %249, %259 : vector<8x128xf32>
    %270 = arith.addf %268, %269 : vector<8x128xf32>
    %271 = math.tanh %270 : vector<8x128xf32>
    %272 = arith.mulf %267, %271 : vector<8x128xf32>
    %c7_i32 = arith.constant 7 : i32
    %273 = arith.index_cast %c7_i32 : i32 to index
    %c0_96 = arith.constant 0 : index
    %c0_97 = arith.constant 0 : index
    %274 = vector.load %arg7[%273, %c0_96, %c0_97] : memref<8x8x512xf32, #tpu.memory_space<vmem>>, vector<1x8x512xf32>
    %275 = vector.shape_cast %274 : vector<1x8x512xf32> to vector<8x512xf32>
    %276 = arith.truncf %272 : vector<8x128xf32> to vector<8x128xbf16>
    %cst_98 = arith.constant dense<0.000000e+00> : vector<8x512xf32>
    %277 = tpu.matmul %276, %11, %cst_98 {dimension_numbers = #tpu.dot_dimension_numbers<[1], [0], [0], [1], [0, 0, 1, 1], [], []>} : vector<8x128xbf16>, vector<128x512xbf16>, vector<8x512xf32> -> vector<8x512xf32>
    %278 = arith.addf %275, %277 : vector<8x512xf32>
    %279 = vector.extract_strided_slice %278 {offsets = [0, 0], sizes = [8, 128], strides = [1, 1]} : vector<8x512xf32> to vector<8x128xf32>
    %cst_99 = arith.constant 5.000000e-01 : f32
    %280 = vector.broadcast %cst_99 : f32 to vector<8x128xf32>
    %281 = arith.mulf %280, %279 : vector<8x128xf32>
    %282 = math.tanh %281 : vector<8x128xf32>
    %cst_100 = arith.constant 5.000000e-01 : f32
    %283 = vector.broadcast %cst_100 : f32 to vector<8x128xf32>
    %284 = arith.mulf %283, %282 : vector<8x128xf32>
    %cst_101 = arith.constant 5.000000e-01 : f32
    %285 = vector.broadcast %cst_101 : f32 to vector<8x128xf32>
    %286 = arith.addf %284, %285 : vector<8x128xf32>
    %287 = vector.extract_strided_slice %278 {offsets = [0, 128], sizes = [8, 128], strides = [1, 1]} : vector<8x512xf32> to vector<8x128xf32>
    %cst_102 = arith.constant 5.000000e-01 : f32
    %288 = vector.broadcast %cst_102 : f32 to vector<8x128xf32>
    %289 = arith.mulf %288, %287 : vector<8x128xf32>
    %290 = math.tanh %289 : vector<8x128xf32>
    %cst_103 = arith.constant 5.000000e-01 : f32
    %291 = vector.broadcast %cst_103 : f32 to vector<8x128xf32>
    %292 = arith.mulf %291, %290 : vector<8x128xf32>
    %cst_104 = arith.constant 5.000000e-01 : f32
    %293 = vector.broadcast %cst_104 : f32 to vector<8x128xf32>
    %294 = arith.addf %292, %293 : vector<8x128xf32>
    %295 = vector.extract_strided_slice %278 {offsets = [0, 256], sizes = [8, 128], strides = [1, 1]} : vector<8x512xf32> to vector<8x128xf32>
    %296 = math.tanh %295 : vector<8x128xf32>
    %297 = vector.extract_strided_slice %278 {offsets = [0, 384], sizes = [8, 128], strides = [1, 1]} : vector<8x512xf32> to vector<8x128xf32>
    %cst_105 = arith.constant 5.000000e-01 : f32
    %298 = vector.broadcast %cst_105 : f32 to vector<8x128xf32>
    %299 = arith.mulf %298, %297 : vector<8x128xf32>
    %300 = math.tanh %299 : vector<8x128xf32>
    %cst_106 = arith.constant 5.000000e-01 : f32
    %301 = vector.broadcast %cst_106 : f32 to vector<8x128xf32>
    %302 = arith.mulf %301, %300 : vector<8x128xf32>
    %cst_107 = arith.constant 5.000000e-01 : f32
    %303 = vector.broadcast %cst_107 : f32 to vector<8x128xf32>
    %304 = arith.addf %302, %303 : vector<8x128xf32>
    %305 = arith.mulf %294, %270 : vector<8x128xf32>
    %306 = arith.mulf %286, %296 : vector<8x128xf32>
    %307 = arith.addf %305, %306 : vector<8x128xf32>
    %308 = math.tanh %307 : vector<8x128xf32>
    %309 = arith.mulf %304, %308 : vector<8x128xf32>
    %c8_i32 = arith.constant 8 : i32
    %c0_108 = arith.constant 0 : index
    %c0_109 = arith.constant 0 : index
    %310 = vector.load %arg4[%c0_108, %c0_109] : memref<1x128xf32, #tpu.memory_space<vmem>>, vector<1x128xf32>
    %311 = vector.broadcast %310 : vector<1x128xf32> to vector<8x128xf32>
    %312 = arith.mulf %309, %311 : vector<8x128xf32>
    %cst_110 = arith.constant dense<0.000000e+00> : vector<8xf32>
    %313 = vector.multi_reduction <add>, %312, %cst_110 [1] : vector<8x128xf32> to vector<8xf32>
    %314 = vector.shape_cast %313 : vector<8xf32> to vector<8x1xf32>
    %c0_111 = arith.constant 0 : index
    %c0_112 = arith.constant 0 : index
    %315 = vector.load %arg5[%c0_111, %c0_112] : memref<1x1xf32, #tpu.memory_space<vmem>>, vector<1x1xf32>
    %316 = vector.broadcast %315 : vector<1x1xf32> to vector<8x1xf32>
    %317 = arith.addf %314, %316 : vector<8x1xf32>
    %c0_113 = arith.constant 0 : index
    %c0_114 = arith.constant 0 : index
    %318 = vector.load %arg6[%c0_113, %c0_114] : memref<8x1xf32, #tpu.memory_space<vmem>>, vector<8x1xf32>
    tpu.vector_store %arg6[%c0_113, %c0_114], %317 {strides = array<i32>} : memref<8x1xf32, #tpu.memory_space<vmem>>, vector<8x1xf32>,
    return
  }
}

</mosaic_0001>

<llo_original>
// kernel: lstm_forward.1
$region0: #{lstm_forward.1}
  #allocation0 [shape = 'u32[]', space=smem, size = 0x4, offset = 0x4, fixed_abs, tag = 'smem constant byte address 0x4 - core index']
  #allocation1 [shape = 'u32[144,128]{1,0:T(1,128)}', space=vmem, size = 0x12000, scoped, tag = 'internal scratch']
  #allocation2 [shape = 'f32[8,8,512]{2,1,0:T(8,128)}', space=vmem, size = 0x20000, scoped, tag = 'scratch operand']
  #allocation3 [shape = 'f32[1,1]{1,0:T(1,128)S(1)}', space=vmem, size = 0x200, scoped, tag = 'scoped memory for lstm_forward.1']
  %s0 = inlined_call_operand.vmem [shape: f32[8,8,1], index: 0, kind: input, shape index: {}]
  %s1 = inlined_call_operand.vmem [shape: f32[1,512], index: 1, kind: input, shape index: {}]
  %s2 = inlined_call_operand.hbm [shape: bf16[128,512], index: 2, kind: input, shape index: {}]
  %s3 = inlined_call_operand.vmem [shape: f32[1,512], index: 3, kind: input, shape index: {}]
  %s4 = inlined_call_operand.vmem [shape: f32[1,128], index: 4, kind: input, shape index: {}]
  %s5 = inlined_call_operand.<no memory space> [shape: f32[1,1], index: 5, kind: input, shape index: {}]
  %s6 = inlined_call_operand.vmem [shape: f32[8,1], index: 6, kind: output, shape index: {}]
  %s7 = sld [smem:[#allocation0]]
  $region38: #{lstm_forward.1} parent=0
    _
  %s9 = ssub.s32 1, %s7
  %s10 = scalar_select 0, %s9, %s7
  %v11 = vstv %s5
  %12 = vst [vmem:[#allocation3] sm:$0x1] %v11
  $region1: #{lstm_forward.1} parent=0
    #allocation4 [shape = 'u8[131072]{0}', space=vmem, size = 0x20000, scoped, tag = 'input window, operand 2, single buffered']
    #allocation5 [shape = 's32[1]{0}', space=sflag, size = 0x4, scoped, tag = 'scoped memory for lstm_forward.1']
    %13 = vsyncpa [#allocation5], 0
    // Predicated region
    $region2: #{lstm_forward.1} parent=1 // pred_check
      _
    $region3: #{lstm_forward.1} parent=1 // pred_check_branch
      %15 = sbr.rel (0) target = $region5
    $region4: #{lstm_forward.1} parent=1 // pred_region
      _
    $region5: #{lstm_forward.1} parent=1 // pred_fallthru
      _
    // Predicated region
    $region6: #{lstm_forward.1} parent=1 // pred_check
      _
    $region7: #{lstm_forward.1} parent=1 // pred_check_branch
      %17 = sbr.rel (0) target = $region9
    $region8: #{lstm_forward.1} parent=1 // pred_region
      _
    $region9: #{lstm_forward.1} parent=1 // pred_fallthru
      _
    // Predicated region
    $region10: #{lstm_forward.1} parent=1 // pred_check
      _
    $region11: #{lstm_forward.1} parent=1 // pred_check_branch
      %19 = sbr.rel (0) target = $region13
    $region12: #{lstm_forward.1} parent=1 // pred_region
      %s21 = ssub.s32 4096, 4096
      %22 = vsyncadd [#allocation5], %s21
      %s23 = sshll.u32 [#allocation4], 4
      %s24 = int_to_ptr.vmem [resolvable:$true] %s23
      %29 = dma.hbm_to_vmem [thread:$0]  %s2, 4096, %s24, [#allocation5], 256, 256, 16
    $region13: #{lstm_forward.1} parent=1 // pred_fallthru
      _
    // Predicated region
    $region14: #{lstm_forward.1} parent=1 // pred_check
      _
    $region15: #{lstm_forward.1} parent=1 // pred_check_branch
      %31 = sbr.rel (0) target = $region17
    $region16: #{lstm_forward.1} parent=1 // pred_region
      _
    $region17: #{lstm_forward.1} parent=1 // pred_fallthru
      _
    // Predicated region
    $region18: #{lstm_forward.1} parent=1 // pred_check
      _
    $region19: #{lstm_forward.1} parent=1 // pred_check_branch
      %33 = sbr.rel (0) target = $region21
    $region20: #{lstm_forward.1} parent=1 // pred_region
      _
    $region21: #{lstm_forward.1} parent=1 // pred_fallthru
      _
    // Predicated region
    $region22: #{lstm_forward.1} parent=1 // pred_check
      _
    $region23: #{lstm_forward.1} parent=1 // pred_check_branch
      %35 = sbr.rel (0) target = $region25
    $region24: #{lstm_forward.1} parent=1 // pred_region
      _
    $region25: #{lstm_forward.1} parent=1 // pred_fallthru
      _
    // Predicated region
    $region26: #{lstm_forward.1} parent=1 // pred_check
      _
    $region27: #{lstm_forward.1} parent=1 // pred_check_branch
      %37 = sbr.rel (0) target = $region29
    $region28: #{lstm_forward.1} parent=1 // pred_region
      %38 = dma.done [#allocation5], 4096
    $region29: #{lstm_forward.1} parent=1 // pred_fallthru
      _
    %v40 = vld [vmem:[%s0] sm:$0xff]
    %v41 = vld [vmem:[%s0 + $0x8] sm:$0xff]
    %v42 = vld [vmem:[%s0 + $0x10] sm:$0xff]
    %v43 = vld [vmem:[%s0 + $0x18] sm:$0xff]
    %v44 = vld [vmem:[%s0 + $0x20] sm:$0xff]
    %v45 = vld [vmem:[%s0 + $0x28] sm:$0xff]
    %v46 = vld [vmem:[%s0 + $0x30] sm:$0xff]
    %v47 = vld [vmem:[%s0 + $0x38] sm:$0xff]
    %v48 = vld [vmem:[%s1] sm:$0xf]
    %50 = vset.pattern.permute.xlu0 0
    %51 = vperm.xlu0 %50, %v40
    %v52 = vpop.permute.xlu0 %51
    %55 = vset.pattern.permute.xlu0 0
    %56 = vperm.xlu0 %55, %v41
    %v57 = vpop.permute.xlu0 %56
    %60 = vset.pattern.permute.xlu0 0
    %61 = vperm.xlu0 %60, %v42
    %v62 = vpop.permute.xlu0 %61
    %65 = vset.pattern.permute.xlu0 0
    %66 = vperm.xlu0 %65, %v43
    %v67 = vpop.permute.xlu0 %66
    %70 = vset.pattern.permute.xlu0 0
    %71 = vperm.xlu0 %70, %v44
    %v72 = vpop.permute.xlu0 %71
    %75 = vset.pattern.permute.xlu0 0
    %76 = vperm.xlu0 %75, %v45
    %v77 = vpop.permute.xlu0 %76
    %80 = vset.pattern.permute.xlu0 0
    %81 = vperm.xlu0 %80, %v46
    %v82 = vpop.permute.xlu0 %81
    %85 = vset.pattern.permute.xlu0 0
    %86 = vperm.xlu0 %85, %v47
    %v87 = vpop.permute.xlu0 %86
    %v90 = vlaneseq
    %v91 = vshrl.u32 %v90, 7
    %v92 = vsub.s32 0, %v91
    %v93 = vrot.slane %v48, %v92
    %v94 = vlaneseq
    %v95 = vshrl.u32 %v94, 7
    %v96 = vsub.s32 1, %v95
    %v97 = vrot.slane %v48, %v96
    %v98 = vlaneseq
    %v99 = vshrl.u32 %v98, 7
    %v100 = vsub.s32 2, %v99
    %v101 = vrot.slane %v48, %v100
    %v102 = vlaneseq
    %v103 = vshrl.u32 %v102, 7
    %v104 = vsub.s32 3, %v103
    %v105 = vrot.slane %v48, %v104
    %v110 = vmul.f32 %v52, %v93
    %v111 = vmul.f32 %v52, %v97
    %v112 = vmul.f32 %v52, %v101
    %v113 = vmul.f32 %v52, %v105
    %v114 = vmul.f32 %v57, %v93
    %v115 = vmul.f32 %v57, %v97
    %v116 = vmul.f32 %v57, %v101
    %v117 = vmul.f32 %v57, %v105
    %v118 = vmul.f32 %v62, %v93
    %v119 = vmul.f32 %v62, %v97
    %v120 = vmul.f32 %v62, %v101
    %v121 = vmul.f32 %v62, %v105
    %v122 = vmul.f32 %v67, %v93
    %v123 = vmul.f32 %v67, %v97
    %v124 = vmul.f32 %v67, %v101
    %v125 = vmul.f32 %v67, %v105
    %v126 = vmul.f32 %v72, %v93
    %v127 = vmul.f32 %v72, %v97
    %v128 = vmul.f32 %v72, %v101
    %v129 = vmul.f32 %v72, %v105
    %v130 = vmul.f32 %v77, %v93
    %v131 = vmul.f32 %v77, %v97
    %v132 = vmul.f32 %v77, %v101
    %v133 = vmul.f32 %v77, %v105
    %v134 = vmul.f32 %v82, %v93
    %v135 = vmul.f32 %v82, %v97
    %v136 = vmul.f32 %v82, %v101
    %v137 = vmul.f32 %v82, %v105
    %v138 = vmul.f32 %v87, %v93
    %v139 = vmul.f32 %v87, %v97
    %v140 = vmul.f32 %v87, %v101
    %v141 = vmul.f32 %v87, %v105
    %v142 = vld [vmem:[%s3] sm:$0xf]
    %v144 = vlaneseq
    %v145 = vshrl.u32 %v144, 7
    %v146 = vsub.s32 0, %v145
    %v147 = vrot.slane %v142, %v146
    %v148 = vlaneseq
    %v149 = vshrl.u32 %v148, 7
    %v150 = vsub.s32 1, %v149
    %v151 = vrot.slane %v142, %v150
    %v152 = vlaneseq
    %v153 = vshrl.u32 %v152, 7
    %v154 = vsub.s32 2, %v153
    %v155 = vrot.slane %v142, %v154
    %v156 = vlaneseq
    %v157 = vshrl.u32 %v156, 7
    %v158 = vsub.s32 3, %v157
    %v159 = vrot.slane %v142, %v158
    %v164 = vadd.f32 %v110, %v147
    %v165 = vadd.f32 %v111, %v151
    %v166 = vadd.f32 %v112, %v155
    %v167 = vadd.f32 %v113, %v159
    %v168 = vadd.f32 %v114, %v147
    %v169 = vadd.f32 %v115, %v151
    %v170 = vadd.f32 %v116, %v155
    %v171 = vadd.f32 %v117, %v159
    %v172 = vadd.f32 %v118, %v147
    %v173 = vadd.f32 %v119, %v151
    %v174 = vadd.f32 %v120, %v155
    %v175 = vadd.f32 %v121, %v159
    %v176 = vadd.f32 %v122, %v147
    %v177 = vadd.f32 %v123, %v151
    %v178 = vadd.f32 %v124, %v155
    %v179 = vadd.f32 %v125, %v159
    %v180 = vadd.f32 %v126, %v147
    %v181 = vadd.f32 %v127, %v151
    %v182 = vadd.f32 %v128, %v155
    %v183 = vadd.f32 %v129, %v159
    %v184 = vadd.f32 %v130, %v147
    %v185 = vadd.f32 %v131, %v151
    %v186 = vadd.f32 %v132, %v155
    %v187 = vadd.f32 %v133, %v159
    %v188 = vadd.f32 %v134, %v147
    %v189 = vadd.f32 %v135, %v151
    %v190 = vadd.f32 %v136, %v155
    %v191 = vadd.f32 %v137, %v159
    %v192 = vadd.f32 %v138, %v147
    %v193 = vadd.f32 %v139, %v151
    %v194 = vadd.f32 %v140, %v155
    %v195 = vadd.f32 %v141, %v159
    %196 = vst [vmem:[#allocation2] sm:$0xff] %v164
    %197 = vst [vmem:[#allocation2 + $0x8] sm:$0xff] %v165
    %198 = vst [vmem:[#allocation2 + $0x10] sm:$0xff] %v166
    %199 = vst [vmem:[#allocation2 + $0x18] sm:$0xff] %v167
    %200 = vst [vmem:[#allocation2 + $0x20] sm:$0xff] %v168
    %201 = vst [vmem:[#allocation2 + $0x28] sm:$0xff] %v169
    %202 = vst [vmem:[#allocation2 + $0x30] sm:$0xff] %v170
    %203 = vst [vmem:[#allocation2 + $0x38] sm:$0xff] %v171
    %204 = vst [vmem:[#allocation2 + $0x40] sm:$0xff] %v172
    %205 = vst [vmem:[#allocation2 + $0x48] sm:$0xff] %v173
    %206 = vst [vmem:[#allocation2 + $0x50] sm:$0xff] %v174
    %207 = vst [vmem:[#allocation2 + $0x58] sm:$0xff] %v175
    %208 = vst [vmem:[#allocation2 + $0x60] sm:$0xff] %v176
    %209 = vst [vmem:[#allocation2 + $0x68] sm:$0xff] %v177
    %210 = vst [vmem:[#allocation2 + $0x70] sm:$0xff] %v178
    %211 = vst [vmem:[#allocation2 + $0x78] sm:$0xff] %v179
    %212 = vst [vmem:[#allocation2 + $0x80] sm:$0xff] %v180
    %213 = vst [vmem:[#allocation2 + $0x88] sm:$0xff] %v181
    %214 = vst [vmem:[#allocation2 + $0x90] sm:$0xff] %v182
    %215 = vst [vmem:[#allocation2 + $0x98] sm:$0xff] %v183
    %216 = vst [vmem:[#allocation2 + $0xa0] sm:$0xff] %v184
    %217 = vst [vmem:[#allocation2 + $0xa8] sm:$0xff] %v185
    %218 = vst [vmem:[#allocation2 + $0xb0] sm:$0xff] %v186
    %219 = vst [vmem:[#allocation2 + $0xb8] sm:$0xff] %v187
    %220 = vst [vmem:[#allocation2 + $0xc0] sm:$0xff] %v188
    %221 = vst [vmem:[#allocation2 + $0xc8] sm:$0xff] %v189
    %222 = vst [vmem:[#allocation2 + $0xd0] sm:$0xff] %v190
    %223 = vst [vmem:[#allocation2 + $0xd8] sm:$0xff] %v191
    %224 = vst [vmem:[#allocation2 + $0xe0] sm:$0xff] %v192
    %225 = vst [vmem:[#allocation2 + $0xe8] sm:$0xff] %v193
    %226 = vst [vmem:[#allocation2 + $0xf0] sm:$0xff] %v194
    %227 = vst [vmem:[#allocation2 + $0xf8] sm:$0xff] %v195
    %v228 = vld [vmem:[#allocation4] sm:$0xff]
    %v229 = vld [vmem:[#allocation4 + $0x8] sm:$0xff]
    %v230 = vld [vmem:[#allocation4 + $0x10] sm:$0xff]
    %v231 = vld [vmem:[#allocation4 + $0x18] sm:$0xff]
    %v232 = vld [vmem:[#allocation4 + $0x20] sm:$0xff]
    %v233 = vld [vmem:[#allocation4 + $0x28] sm:$0xff]
    %v234 = vld [vmem:[#allocation4 + $0x30] sm:$0xff]
    %v235 = vld [vmem:[#allocation4 + $0x38] sm:$0xff]
    %v236 = vld [vmem:[#allocation4 + $0x40] sm:$0xff]
    %v237 = vld [vmem:[#allocation4 + $0x48] sm:$0xff]
    %v238 = vld [vmem:[#allocation4 + $0x50] sm:$0xff]
    %v239 = vld [vmem:[#allocation4 + $0x58] sm:$0xff]
    %v240 = vld [vmem:[#allocation4 + $0x60] sm:$0xff]
    %v241 = vld [vmem:[#allocation4 + $0x68] sm:$0xff]
    %v242 = vld [vmem:[#allocation4 + $0x70] sm:$0xff]
    %v243 = vld [vmem:[#allocation4 + $0x78] sm:$0xff]
    %v244 = vld [vmem:[#allocation4 + $0x80] sm:$0xff]
    %v245 = vld [vmem:[#allocation4 + $0x88] sm:$0xff]
    %v246 = vld [vmem:[#allocation4 + $0x90] sm:$0xff]
    %v247 = vld [vmem:[#allocation4 + $0x98] sm:$0xff]
    %v248 = vld [vmem:[#allocation4 + $0xa0] sm:$0xff]
    %v249 = vld [vmem:[#allocation4 + $0xa8] sm:$0xff]
    %v250 = vld [vmem:[#allocation4 + $0xb0] sm:$0xff]
    %v251 = vld [vmem:[#allocation4 + $0xb8] sm:$0xff]
    %v252 = vld [vmem:[#allocation4 + $0xc0] sm:$0xff]
    %v253 = vld [vmem:[#allocation4 + $0xc8] sm:$0xff]
    %v254 = vld [vmem:[#allocation4 + $0xd0] sm:$0xff]
    %v255 = vld [vmem:[#allocation4 + $0xd8] sm:$0xff]
    %v256 = vld [vmem:[#allocation4 + $0xe0] sm:$0xff]
    %v257 = vld [vmem:[#allocation4 + $0xe8] sm:$0xff]
    %v258 = vld [vmem:[#allocation4 + $0xf0] sm:$0xff]
    %v259 = vld [vmem:[#allocation4 + $0xf8] sm:$0xff]
    %v260 = vld [vmem:[#allocation2] sm:$0xff]
    %v261 = vld [vmem:[#allocation2 + $0x8] sm:$0xff]
    %v262 = vld [vmem:[#allocation2 + $0x10] sm:$0xff]
    %v263 = vld [vmem:[#allocation2 + $0x18] sm:$0xff]
    %v296 = vunpack.c.l.b16 %v228
    %v297 = vunpack.c.h.b16 %v228
    %v298 = vunpack.c.l.b16 %v229
    %v299 = vunpack.c.h.b16 %v229
    %v300 = vunpack.c.l.b16 %v230
    %v301 = vunpack.c.h.b16 %v230
    %v302 = vunpack.c.l.b16 %v231
    %v303 = vunpack.c.h.b16 %v231
    %v304 = vunpack.c.l.b16 %v232
    %v305 = vunpack.c.h.b16 %v232
    %v306 = vunpack.c.l.b16 %v233
    %v307 = vunpack.c.h.b16 %v233
    %v308 = vunpack.c.l.b16 %v234
    %v309 = vunpack.c.h.b16 %v234
    %v310 = vunpack.c.l.b16 %v235
    %v311 = vunpack.c.h.b16 %v235
    %v312 = vunpack.c.l.b16 %v236
    %v313 = vunpack.c.h.b16 %v236
    %v314 = vunpack.c.l.b16 %v237
    %v315 = vunpack.c.h.b16 %v237
    %v316 = vunpack.c.l.b16 %v238
    %v317 = vunpack.c.h.b16 %v238
    %v318 = vunpack.c.l.b16 %v239
    %v319 = vunpack.c.h.b16 %v239
    %v320 = vunpack.c.l.b16 %v240
    %v321 = vunpack.c.h.b16 %v240
    %v322 = vunpack.c.l.b16 %v241
    %v323 = vunpack.c.h.b16 %v241
    %v324 = vunpack.c.l.b16 %v242
    %v325 = vunpack.c.h.b16 %v242
    %v326 = vunpack.c.l.b16 %v243
    %v327 = vunpack.c.h.b16 %v243
    %v328 = vunpack.c.l.b16 %v244
    %v329 = vunpack.c.h.b16 %v244
    %v330 = vunpack.c.l.b16 %v245
    %v331 = vunpack.c.h.b16 %v245
    %v332 = vunpack.c.l.b16 %v246
    %v333 = vunpack.c.h.b16 %v246
    %v334 = vunpack.c.l.b16 %v247
    %v335 = vunpack.c.h.b16 %v247
    %v336 = vunpack.c.l.b16 %v248
    %v337 = vunpack.c.h.b16 %v248
    %v338 = vunpack.c.l.b16 %v249
    %v339 = vunpack.c.h.b16 %v249
    %v340 = vunpack.c.l.b16 %v250
    %v341 = vunpack.c.h.b16 %v250
    %v342 = vunpack.c.l.b16 %v251
    %v343 = vunpack.c.h.b16 %v251
    %v344 = vunpack.c.l.b16 %v252
    %v345 = vunpack.c.h.b16 %v252
    %v346 = vunpack.c.l.b16 %v253
    %v347 = vunpack.c.h.b16 %v253
    %v348 = vunpack.c.l.b16 %v254
    %v349 = vunpack.c.h.b16 %v254
    %v350 = vunpack.c.l.b16 %v255
    %v351 = vunpack.c.h.b16 %v255
    %v352 = vunpack.c.l.b16 %v256
    %v353 = vunpack.c.h.b16 %v256
    %v354 = vunpack.c.l.b16 %v257
    %v355 = vunpack.c.h.b16 %v257
    %v356 = vunpack.c.l.b16 %v258
    %v357 = vunpack.c.h.b16 %v258
    %v358 = vunpack.c.l.b16 %v259
    %v359 = vunpack.c.h.b16 %v259
    %v360 = vpack.c.b16 %v300, %v296
    %v361 = vpack.c.b16 %v301, %v297
    %v362 = vpack.c.b16 %v302, %v298
    %v363 = vpack.c.b16 %v303, %v299
    %v364 = vpack.c.b16 %v308, %v304
    %v365 = vpack.c.b16 %v309, %v305
    %v366 = vpack.c.b16 %v310, %v306
    %v367 = vpack.c.b16 %v311, %v307
    %v368 = vpack.c.b16 %v316, %v312
    %v369 = vpack.c.b16 %v317, %v313
    %v370 = vpack.c.b16 %v318, %v314
    %v371 = vpack.c.b16 %v319, %v315
    %v372 = vpack.c.b16 %v324, %v320
    %v373 = vpack.c.b16 %v325, %v321
    %v374 = vpack.c.b16 %v326, %v322
    %v375 = vpack.c.b16 %v327, %v323
    %v376 = vpack.c.b16 %v332, %v328
    %v377 = vpack.c.b16 %v333, %v329
    %v378 = vpack.c.b16 %v334, %v330
    %v379 = vpack.c.b16 %v335, %v331
    %v380 = vpack.c.b16 %v340, %v336
    %v381 = vpack.c.b16 %v341, %v337
    %v382 = vpack.c.b16 %v342, %v338
    %v383 = vpack.c.b16 %v343, %v339
    %v384 = vpack.c.b16 %v348, %v344
    %v385 = vpack.c.b16 %v349, %v345
    %v386 = vpack.c.b16 %v350, %v346
    %v387 = vpack.c.b16 %v351, %v347
    %v388 = vpack.c.b16 %v356, %v352
    %v389 = vpack.c.b16 %v357, %v353
    %v390 = vpack.c.b16 %v358, %v354
    %v391 = vpack.c.b16 %v359, %v355
    %424 = vmatprep.subr.bf16.mxu0 %v361
    %425 = vmatpush1.bf16.msra.mxu0 %v360
    %426 = vmatprep.subr.bf16.mxu0 %v365
    %427 = vmatpush1.bf16.msra.mxu0 %v364
    %428 = vmatprep.subr.bf16.mxu0 %v369
    %429 = vmatpush1.bf16.msra.mxu0 %v368
    %430 = vmatprep.subr.bf16.mxu0 %v373
    %431 = vmatpush1.bf16.msra.mxu0 %v372
    %432 = vmatprep.subr.bf16.mxu0 %v377
    %433 = vmatpush1.bf16.msra.mxu0 %v376
    %434 = vmatprep.subr.bf16.mxu0 %v381
    %435 = vmatpush1.bf16.msra.mxu0 %v380
    %436 = vmatprep.subr.bf16.mxu0 %v385
    %437 = vmatpush1.bf16.msra.mxu0 %v384
    %438 = vmatprep.subr.bf16.mxu0 %v389
    %439 = vmatpush1.bf16.msra.mxu0 %v388
    %440 = vmatprep.subr.bf16.mxu0 0
    %441 = vmatpush1.bf16.msra.mxu0 0
    %442 = vmatprep.subr.bf16.mxu0 0
    %443 = vmatpush1.bf16.msra.mxu0 0
    %444 = vmatprep.subr.bf16.mxu0 0
    %445 = vmatpush1.bf16.msra.mxu0 0
    %446 = vmatprep.subr.bf16.mxu0 0
    %447 = vmatpush1.bf16.msra.mxu0 0
    %448 = vmatprep.subr.bf16.mxu0 0
    %449 = vmatpush1.bf16.msra.mxu0 0
    %450 = vmatprep.subr.bf16.mxu0 0
    %451 = vmatpush1.bf16.msra.mxu0 0
    %452 = vmatprep.subr.bf16.mxu0 0
    %453 = vmatpush1.bf16.msra.mxu0 0
    %454 = vmatprep.subr.bf16.mxu0 0
    %455 = vmatpush1.bf16.msra.mxu0 0
    %456 = vmatprep.mubr.bf16.mxu0 0
    %457 = vmatmul.mubr.bf16.gmra.mrb[0].mxu0 0
    %v458 = vpop.f32.mrb[0].mxu0
    %v459 = vadd.f32 0.0, %v458
    %v460 = vpop.f32.mrb[0].mxu0
    %v461 = vadd.f32 0.0, %v460
    %v462 = vpop.f32.mrb[0].mxu0
    %v463 = vpop.f32.mrb[0].mxu0
    %464 = vdwg.mxu0
    %465 = vmatprep.subr.bf16.mxu0 %v363
    %466 = vmatpush1.bf16.msra.mxu0 %v362
    %467 = vmatprep.subr.bf16.mxu0 %v367
    %468 = vmatpush1.bf16.msra.mxu0 %v366
    %469 = vmatprep.subr.bf16.mxu0 %v371
    %470 = vmatpush1.bf16.msra.mxu0 %v370
    %471 = vmatprep.subr.bf16.mxu0 %v375
    %472 = vmatpush1.bf16.msra.mxu0 %v374
    %473 = vmatprep.subr.bf16.mxu0 %v379
    %474 = vmatpush1.bf16.msra.mxu0 %v378
    %475 = vmatprep.subr.bf16.mxu0 %v383
    %476 = vmatpush1.bf16.msra.mxu0 %v382
    %477 = vmatprep.subr.bf16.mxu0 %v387
    %478 = vmatpush1.bf16.msra.mxu0 %v386
    %479 = vmatprep.subr.bf16.mxu0 %v391
    %480 = vmatpush1.bf16.msra.mxu0 %v390
    %481 = vmatprep.subr.bf16.mxu0 0
    %482 = vmatpush1.bf16.msra.mxu0 0
    %483 = vmatprep.subr.bf16.mxu0 0
    %484 = vmatpush1.bf16.msra.mxu0 0
    %485 = vmatprep.subr.bf16.mxu0 0
    %486 = vmatpush1.bf16.msra.mxu0 0
    %487 = vmatprep.subr.bf16.mxu0 0
    %488 = vmatpush1.bf16.msra.mxu0 0
    %489 = vmatprep.subr.bf16.mxu0 0
    %490 = vmatpush1.bf16.msra.mxu0 0
    %491 = vmatprep.subr.bf16.mxu0 0
    %492 = vmatpush1.bf16.msra.mxu0 0
    %493 = vmatprep.subr.bf16.mxu0 0
    %494 = vmatpush1.bf16.msra.mxu0 0
    %495 = vmatprep.subr.bf16.mxu0 0
    %496 = vmatpush1.bf16.msra.mxu0 0
    %497 = vmatprep.mubr.bf16.mxu0 0
    %498 = vmatmul.mubr.bf16.gmra.mrb[0].mxu0 0
    %v499 = vpop.f32.mrb[0].mxu0
    %v500 = vadd.f32 0.0, %v499
    %v501 = vpop.f32.mrb[0].mxu0
    %v502 = vadd.f32 0.0, %v501
    %v503 = vpop.f32.mrb[0].mxu0
    %v504 = vpop.f32.mrb[0].mxu0
    %505 = vdwg.mxu0
    %v506 = vadd.f32 %v260, %v459
    %v507 = vadd.f32 %v261, %v461
    %v508 = vadd.f32 %v262, %v500
    %v509 = vadd.f32 %v263, %v502
    %v510 = vmul.f32 %v506, 0.5
    %v511 = vtanh.pop %v510
    %v512 = vmul.f32 %v511, 0.5
    %v513 = vadd.f32 %v512, 0.5
    %v514 = vmul.f32 %v507, 0.5
    %v515 = vtanh.pop %v514
    %v516 = vmul.f32 %v515, 0.5
    %v517 = vadd.f32 %v516, 0.5
    %v518 = vtanh.pop %v508
    %v519 = vmul.f32 %v509, 0.5
    %v520 = vtanh.pop %v519
    %v521 = vmul.f32 %v520, 0.5
    %v522 = vadd.f32 %v521, 0.5
    %v523 = vmul.f32 %v517, 0.0
    %v524 = vmul.f32 %v513, %v518
    %v525 = vadd.f32 %v523, %v524
    %v526 = vtanh.pop %v525
    %v527 = vmul.f32 %v522, %v526
    %s528 = scalar_lea.vmem [#allocation2], 32
    %v529 = vld [vmem:[%s528] sm:$0xff]
    %v530 = vld [vmem:[%s528 + $0x8] sm:$0xff]
    %v531 = vld [vmem:[%s528 + $0x10] sm:$0xff]
    %v532 = vld [vmem:[%s528 + $0x18] sm:$0xff]
    %v533 = vpack.c.bf16 %v527, %v527
    %534 = vmatprep.subr.bf16.mxu0 %v361
    %535 = vmatpush1.bf16.msra.mxu0 %v360
    %536 = vmatprep.subr.bf16.mxu0 %v365
    %537 = vmatpush1.bf16.msra.mxu0 %v364
    %538 = vmatprep.subr.bf16.mxu0 %v369
    %539 = vmatpush1.bf16.msra.mxu0 %v368
    %540 = vmatprep.subr.bf16.mxu0 %v373
    %541 = vmatpush1.bf16.msra.mxu0 %v372
    %542 = vmatprep.subr.bf16.mxu0 %v377
    %543 = vmatpush1.bf16.msra.mxu0 %v376
    %544 = vmatprep.subr.bf16.mxu0 %v381
    %545 = vmatpush1.bf16.msra.mxu0 %v380
    %546 = vmatprep.subr.bf16.mxu0 %v385
    %547 = vmatpush1.bf16.msra.mxu0 %v384
    %548 = vmatprep.subr.bf16.mxu0 %v389
    %549 = vmatpush1.bf16.msra.mxu0 %v388
    %550 = vmatprep.subr.bf16.mxu0 0
    %551 = vmatpush1.bf16.msra.mxu0 0
    %552 = vmatprep.subr.bf16.mxu0 0
    %553 = vmatpush1.bf16.msra.mxu0 0
    %554 = vmatprep.subr.bf16.mxu0 0
    %555 = vmatpush1.bf16.msra.mxu0 0
    %556 = vmatprep.subr.bf16.mxu0 0
    %557 = vmatpush1.bf16.msra.mxu0 0
    %558 = vmatprep.subr.bf16.mxu0 0
    %559 = vmatpush1.bf16.msra.mxu0 0
    %560 = vmatprep.subr.bf16.mxu0 0
    %561 = vmatpush1.bf16.msra.mxu0 0
    %562 = vmatprep.subr.bf16.mxu0 0
    %563 = vmatpush1.bf16.msra.mxu0 0
    %564 = vmatprep.subr.bf16.mxu0 0
    %565 = vmatpush1.bf16.msra.mxu0 0
    %566 = vmatprep.mubr.bf16.mxu0 0
    %567 = vmatmul.mubr.bf16.gmra.mrb[0].mxu0 %v533
    %v568 = vpop.f32.mrb[0].mxu0
    %v569 = vadd.f32 0.0, %v568
    %v570 = vpop.f32.mrb[0].mxu0
    %v571 = vadd.f32 0.0, %v570
    %v572 = vpop.f32.mrb[0].mxu0
    %v573 = vpop.f32.mrb[0].mxu0
    %574 = vdwg.mxu0
    %575 = vmatprep.subr.bf16.mxu0 %v363
    %576 = vmatpush1.bf16.msra.mxu0 %v362
    %577 = vmatprep.subr.bf16.mxu0 %v367
    %578 = vmatpush1.bf16.msra.mxu0 %v366
    %579 = vmatprep.subr.bf16.mxu0 %v371
    %580 = vmatpush1.bf16.msra.mxu0 %v370
    %581 = vmatprep.subr.bf16.mxu0 %v375
    %582 = vmatpush1.bf16.msra.mxu0 %v374
    %583 = vmatprep.subr.bf16.mxu0 %v379
    %584 = vmatpush1.bf16.msra.mxu0 %v378
    %585 = vmatprep.subr.bf16.mxu0 %v383
    %586 = vmatpush1.bf16.msra.mxu0 %v382
    %587 = vmatprep.subr.bf16.mxu0 %v387
    %588 = vmatpush1.bf16.msra.mxu0 %v386
    %589 = vmatprep.subr.bf16.mxu0 %v391
    %590 = vmatpush1.bf16.msra.mxu0 %v390
    %591 = vmatprep.subr.bf16.mxu0 0
    %592 = vmatpush1.bf16.msra.mxu0 0
    %593 = vmatprep.subr.bf16.mxu0 0
    %594 = vmatpush1.bf16.msra.mxu0 0
    %595 = vmatprep.subr.bf16.mxu0 0
    %596 = vmatpush1.bf16.msra.mxu0 0
    %597 = vmatprep.subr.bf16.mxu0 0
    %598 = vmatpush1.bf16.msra.mxu0 0
    %599 = vmatprep.subr.bf16.mxu0 0
    %600 = vmatpush1.bf16.msra.mxu0 0
    %601 = vmatprep.subr.bf16.mxu0 0
    %602 = vmatpush1.bf16.msra.mxu0 0
    %603 = vmatprep.subr.bf16.mxu0 0
    %604 = vmatpush1.bf16.msra.mxu0 0
    %605 = vmatprep.subr.bf16.mxu0 0
    %606 = vmatpush1.bf16.msra.mxu0 0
    %607 = vmatprep.mubr.bf16.mxu0 0
    %608 = vmatmul.mubr.bf16.gmra.mrb[0].mxu0 %v533
    %v609 = vpop.f32.mrb[0].mxu0
    %v610 = vadd.f32 0.0, %v609
    %v611 = vpop.f32.mrb[0].mxu0
    %v612 = vadd.f32 0.0, %v611
    %v613 = vpop.f32.mrb[0].mxu0
    %v614 = vpop.f32.mrb[0].mxu0
    %615 = vdwg.mxu0
    %v616 = vadd.f32 %v529, %v569
    %v617 = vadd.f32 %v530, %v571
    %v618 = vadd.f32 %v531, %v610
    %v619 = vadd.f32 %v532, %v612
    %v620 = vmul.f32 %v616, 0.5
    %v621 = vtanh.pop %v620
    %v622 = vmul.f32 %v621, 0.5
    %v623 = vadd.f32 %v622, 0.5
    %v624 = vmul.f32 %v617, 0.5
    %v625 = vtanh.pop %v624
    %v626 = vmul.f32 %v625, 0.5
    %v627 = vadd.f32 %v626, 0.5
    %v628 = vtanh.pop %v618
    %v629 = vmul.f32 %v619, 0.5
    %v630 = vtanh.pop %v629
    %v631 = vmul.f32 %v630, 0.5
    %v632 = vadd.f32 %v631, 0.5
    %v633 = vmul.f32 %v627, %v525
    %v634 = vmul.f32 %v623, %v628
    %v635 = vadd.f32 %v633, %v634
    %v636 = vtanh.pop %v635
    %v637 = vmul.f32 %v632, %v636
    %s638 = scalar_lea.vmem [#allocation2], 64
    %v639 = vld [vmem:[%s638] sm:$0xff]
    %v640 = vld [vmem:[%s638 + $0x8] sm:$0xff]
    %v641 = vld [vmem:[%s638 + $0x10] sm:$0xff]
    %v642 = vld [vmem:[%s638 + $0x18] sm:$0xff]
    %v643 = vpack.c.bf16 %v637, %v637
    %644 = vmatprep.subr.bf16.mxu0 %v361
    %645 = vmatpush1.bf16.msra.mxu0 %v360
    %646 = vmatprep.subr.bf16.mxu0 %v365
    %647 = vmatpush1.bf16.msra.mxu0 %v364
    %648 = vmatprep.subr.bf16.mxu0 %v369
    %649 = vmatpush1.bf16.msra.mxu0 %v368
    %650 = vmatprep.subr.bf16.mxu0 %v373
    %651 = vmatpush1.bf16.msra.mxu0 %v372
    %652 = vmatprep.subr.bf16.mxu0 %v377
    %653 = vmatpush1.bf16.msra.mxu0 %v376
    %654 = vmatprep.subr.bf16.mxu0 %v381
    %655 = vmatpush1.bf16.msra.mxu0 %v380
    %656 = vmatprep.subr.bf16.mxu0 %v385
    %657 = vmatpush1.bf16.msra.mxu0 %v384
    %658 = vmatprep.subr.bf16.mxu0 %v389
    %659 = vmatpush1.bf16.msra.mxu0 %v388
    %660 = vmatprep.subr.bf16.mxu0 0
    %661 = vmatpush1.bf16.msra.mxu0 0
    %662 = vmatprep.subr.bf16.mxu0 0
    %663 = vmatpush1.bf16.msra.mxu0 0
    %664 = vmatprep.subr.bf16.mxu0 0
    %665 = vmatpush1.bf16.msra.mxu0 0
    %666 = vmatprep.subr.bf16.mxu0 0
    %667 = vmatpush1.bf16.msra.mxu0 0
    %668 = vmatprep.subr.bf16.mxu0 0
    %669 = vmatpush1.bf16.msra.mxu0 0
    %670 = vmatprep.subr.bf16.mxu0 0
    %671 = vmatpush1.bf16.msra.mxu0 0
    %672 = vmatprep.subr.bf16.mxu0 0
    %673 = vmatpush1.bf16.msra.mxu0 0
    %674 = vmatprep.subr.bf16.mxu0 0
    %675 = vmatpush1.bf16.msra.mxu0 0
    %676 = vmatprep.mubr.bf16.mxu0 0
    %677 = vmatmul.mubr.bf16.gmra.mrb[0].mxu0 %v643
    %v678 = vpop.f32.mrb[0].mxu0
    %v679 = vadd.f32 0.0, %v678
    %v680 = vpop.f32.mrb[0].mxu0
    %v681 = vadd.f32 0.0, %v680
    %v682 = vpop.f32.mrb[0].mxu0
    %v683 = vpop.f32.mrb[0].mxu0
    %684 = vdwg.mxu0
    %685 = vmatprep.subr.bf16.mxu0 %v363
    %686 = vmatpush1.bf16.msra.mxu0 %v362
    %687 = vmatprep.subr.bf16.mxu0 %v367
    %688 = vmatpush1.bf16.msra.mxu0 %v366
    %689 = vmatprep.subr.bf16.mxu0 %v371
    %690 = vmatpush1.bf16.msra.mxu0 %v370
    %691 = vmatprep.subr.bf16.mxu0 %v375
    %692 = vmatpush1.bf16.msra.mxu0 %v374
    %693 = vmatprep.subr.bf16.mxu0 %v379
    %694 = vmatpush1.bf16.msra.mxu0 %v378
    %695 = vmatprep.subr.bf16.mxu0 %v383
    %696 = vmatpush1.bf16.msra.mxu0 %v382
    %697 = vmatprep.subr.bf16.mxu0 %v387
    %698 = vmatpush1.bf16.msra.mxu0 %v386
    %699 = vmatprep.subr.bf16.mxu0 %v391
    %700 = vmatpush1.bf16.msra.mxu0 %v390
    %701 = vmatprep.subr.bf16.mxu0 0
    %702 = vmatpush1.bf16.msra.mxu0 0
    %703 = vmatprep.subr.bf16.mxu0 0
    %704 = vmatpush1.bf16.msra.mxu0 0
    %705 = vmatprep.subr.bf16.mxu0 0
    %706 = vmatpush1.bf16.msra.mxu0 0
    %707 = vmatprep.subr.bf16.mxu0 0
    %708 = vmatpush1.bf16.msra.mxu0 0
    %709 = vmatprep.subr.bf16.mxu0 0
    %710 = vmatpush1.bf16.msra.mxu0 0
    %711 = vmatprep.subr.bf16.mxu0 0
    %712 = vmatpush1.bf16.msra.mxu0 0
    %713 = vmatprep.subr.bf16.mxu0 0
    %714 = vmatpush1.bf16.msra.mxu0 0
    %715 = vmatprep.subr.bf16.mxu0 0
    %716 = vmatpush1.bf16.msra.mxu0 0
    %717 = vmatprep.mubr.bf16.mxu0 0
    %718 = vmatmul.mubr.bf16.gmra.mrb[0].mxu0 %v643
    %v719 = vpop.f32.mrb[0].mxu0
    %v720 = vadd.f32 0.0, %v719
    %v721 = vpop.f32.mrb[0].mxu0
    %v722 = vadd.f32 0.0, %v721
    %v723 = vpop.f32.mrb[0].mxu0
    %v724 = vpop.f32.mrb[0].mxu0
    %725 = vdwg.mxu0
    %v726 = vadd.f32 %v639, %v679
    %v727 = vadd.f32 %v640, %v681
    %v728 = vadd.f32 %v641, %v720
    %v729 = vadd.f32 %v642, %v722
    %v730 = vmul.f32 %v726, 0.5
    %v731 = vtanh.pop %v730
    %v732 = vmul.f32 %v731, 0.5
    %v733 = vadd.f32 %v732, 0.5
    %v734 = vmul.f32 %v727, 0.5
    %v735 = vtanh.pop %v734
    %v736 = vmul.f32 %v735, 0.5
    %v737 = vadd.f32 %v736, 0.5
    %v738 = vtanh.pop %v728
    %v739 = vmul.f32 %v729, 0.5
    %v740 = vtanh.pop %v739
    %v741 = vmul.f32 %v740, 0.5
    %v742 = vadd.f32 %v741, 0.5
    %v743 = vmul.f32 %v737, %v635
    %v744 = vmul.f32 %v733, %v738
    %v745 = vadd.f32 %v743, %v744
    %v746 = vtanh.pop %v745
    %v747 = vmul.f32 %v742, %v746
    %s748 = scalar_lea.vmem [#allocation2], 96
    %v749 = vld [vmem:[%s748] sm:$0xff]
    %v750 = vld [vmem:[%s748 + $0x8] sm:$0xff]
    %v751 = vld [vmem:[%s748 + $0x10] sm:$0xff]
    %v752 = vld [vmem:[%s748 + $0x18] sm:$0xff]
    %v753 = vpack.c.bf16 %v747, %v747
    %754 = vmatprep.subr.bf16.mxu0 %v361
    %755 = vmatpush1.bf16.msra.mxu0 %v360
    %756 = vmatprep.subr.bf16.mxu0 %v365
    %757 = vmatpush1.bf16.msra.mxu0 %v364
    %758 = vmatprep.subr.bf16.mxu0 %v369
    %759 = vmatpush1.bf16.msra.mxu0 %v368
    %760 = vmatprep.subr.bf16.mxu0 %v373
    %761 = vmatpush1.bf16.msra.mxu0 %v372
    %762 = vmatprep.subr.bf16.mxu0 %v377
    %763 = vmatpush1.bf16.msra.mxu0 %v376
    %764 = vmatprep.subr.bf16.mxu0 %v381
    %765 = vmatpush1.bf16.msra.mxu0 %v380
    %766 = vmatprep.subr.bf16.mxu0 %v385
    %767 = vmatpush1.bf16.msra.mxu0 %v384
    %768 = vmatprep.subr.bf16.mxu0 %v389
    %769 = vmatpush1.bf16.msra.mxu0 %v388
    %770 = vmatprep.subr.bf16.mxu0 0
    %771 = vmatpush1.bf16.msra.mxu0 0
    %772 = vmatprep.subr.bf16.mxu0 0
    %773 = vmatpush1.bf16.msra.mxu0 0
    %774 = vmatprep.subr.bf16.mxu0 0
    %775 = vmatpush1.bf16.msra.mxu0 0
    %776 = vmatprep.subr.bf16.mxu0 0
    %777 = vmatpush1.bf16.msra.mxu0 0
    %778 = vmatprep.subr.bf16.mxu0 0
    %779 = vmatpush1.bf16.msra.mxu0 0
    %780 = vmatprep.subr.bf16.mxu0 0
    %781 = vmatpush1.bf16.msra.mxu0 0
    %782 = vmatprep.subr.bf16.mxu0 0
    %783 = vmatpush1.bf16.msra.mxu0 0
    %784 = vmatprep.subr.bf16.mxu0 0
    %785 = vmatpush1.bf16.msra.mxu0 0
    %786 = vmatprep.mubr.bf16.mxu0 0
    %787 = vmatmul.mubr.bf16.gmra.mrb[0].mxu0 %v753
    %v788 = vpop.f32.mrb[0].mxu0
    %v789 = vadd.f32 0.0, %v788
    %v790 = vpop.f32.mrb[0].mxu0
    %v791 = vadd.f32 0.0, %v790
    %v792 = vpop.f32.mrb[0].mxu0
    %v793 = vpop.f32.mrb[0].mxu0
    %794 = vdwg.mxu0
    %795 = vmatprep.subr.bf16.mxu0 %v363
    %796 = vmatpush1.bf16.msra.mxu0 %v362
    %797 = vmatprep.subr.bf16.mxu0 %v367
    %798 = vmatpush1.bf16.msra.mxu0 %v366
    %799 = vmatprep.subr.bf16.mxu0 %v371
    %800 = vmatpush1.bf16.msra.mxu0 %v370
    %801 = vmatprep.subr.bf16.mxu0 %v375
    %802 = vmatpush1.bf16.msra.mxu0 %v374
    %803 = vmatprep.subr.bf16.mxu0 %v379
    %804 = vmatpush1.bf16.msra.mxu0 %v378
    %805 = vmatprep.subr.bf16.mxu0 %v383
    %806 = vmatpush1.bf16.msra.mxu0 %v382
    %807 = vmatprep.subr.bf16.mxu0 %v387
    %808 = vmatpush1.bf16.msra.mxu0 %v386
    %809 = vmatprep.subr.bf16.mxu0 %v391
    %810 = vmatpush1.bf16.msra.mxu0 %v390
    %811 = vmatprep.subr.bf16.mxu0 0
    %812 = vmatpush1.bf16.msra.mxu0 0
    %813 = vmatprep.subr.bf16.mxu0 0
    %814 = vmatpush1.bf16.msra.mxu0 0
    %815 = vmatprep.subr.bf16.mxu0 0
    %816 = vmatpush1.bf16.msra.mxu0 0
    %817 = vmatprep.subr.bf16.mxu0 0
    %818 = vmatpush1.bf16.msra.mxu0 0
    %819 = vmatprep.subr.bf16.mxu0 0
    %820 = vmatpush1.bf16.msra.mxu0 0
    %821 = vmatprep.subr.bf16.mxu0 0
    %822 = vmatpush1.bf16.msra.mxu0 0
    %823 = vmatprep.subr.bf16.mxu0 0
    %824 = vmatpush1.bf16.msra.mxu0 0
    %825 = vmatprep.subr.bf16.mxu0 0
    %826 = vmatpush1.bf16.msra.mxu0 0
    %827 = vmatprep.mubr.bf16.mxu0 0
    %828 = vmatmul.mubr.bf16.gmra.mrb[0].mxu0 %v753
    %v829 = vpop.f32.mrb[0].mxu0
    %v830 = vadd.f32 0.0, %v829
    %v831 = vpop.f32.mrb[0].mxu0
    %v832 = vadd.f32 0.0, %v831
    %v833 = vpop.f32.mrb[0].mxu0
    %v834 = vpop.f32.mrb[0].mxu0
    %835 = vdwg.mxu0
    %v836 = vadd.f32 %v749, %v789
    %v837 = vadd.f32 %v750, %v791
    %v838 = vadd.f32 %v751, %v830
    %v839 = vadd.f32 %v752, %v832
    %v840 = vmul.f32 %v836, 0.5
    %v841 = vtanh.pop %v840
    %v842 = vmul.f32 %v841, 0.5
    %v843 = vadd.f32 %v842, 0.5
    %v844 = vmul.f32 %v837, 0.5
    %v845 = vtanh.pop %v844
    %v846 = vmul.f32 %v845, 0.5
    %v847 = vadd.f32 %v846, 0.5
    %v848 = vtanh.pop %v838
    %v849 = vmul.f32 %v839, 0.5
    %v850 = vtanh.pop %v849
    %v851 = vmul.f32 %v850, 0.5
    %v852 = vadd.f32 %v851, 0.5
    %v853 = vmul.f32 %v847, %v745
    %v854 = vmul.f32 %v843, %v848
    %v855 = vadd.f32 %v853, %v854
    %v856 = vtanh.pop %v855
    %v857 = vmul.f32 %v852, %v856
    %s858 = scalar_lea.vmem [#allocation2], 128
    %v859 = vld [vmem:[%s858] sm:$0xff]
    %v860 = vld [vmem:[%s858 + $0x8] sm:$0xff]
    %v861 = vld [vmem:[%s858 + $0x10] sm:$0xff]
    %v862 = vld [vmem:[%s858 + $0x18] sm:$0xff]
    %v863 = vpack.c.bf16 %v857, %v857
    %864 = vmatprep.subr.bf16.mxu0 %v361
    %865 = vmatpush1.bf16.msra.mxu0 %v360
    %866 = vmatprep.subr.bf16.mxu0 %v365
    %867 = vmatpush1.bf16.msra.mxu0 %v364
    %868 = vmatprep.subr.bf16.mxu0 %v369
    %869 = vmatpush1.bf16.msra.mxu0 %v368
    %870 = vmatprep.subr.bf16.mxu0 %v373
    %871 = vmatpush1.bf16.msra.mxu0 %v372
    %872 = vmatprep.subr.bf16.mxu0 %v377
    %873 = vmatpush1.bf16.msra.mxu0 %v376
    %874 = vmatprep.subr.bf16.mxu0 %v381
    %875 = vmatpush1.bf16.msra.mxu0 %v380
    %876 = vmatprep.subr.bf16.mxu0 %v385
    %877 = vmatpush1.bf16.msra.mxu0 %v384
    %878 = vmatprep.subr.bf16.mxu0 %v389
    %879 = vmatpush1.bf16.msra.mxu0 %v388
    %880 = vmatprep.subr.bf16.mxu0 0
    %881 = vmatpush1.bf16.msra.mxu0 0
    %882 = vmatprep.subr.bf16.mxu0 0
    %883 = vmatpush1.bf16.msra.mxu0 0
    %884 = vmatprep.subr.bf16.mxu0 0
    %885 = vmatpush1.bf16.msra.mxu0 0
    %886 = vmatprep.subr.bf16.mxu0 0
    %887 = vmatpush1.bf16.msra.mxu0 0
    %888 = vmatprep.subr.bf16.mxu0 0
    %889 = vmatpush1.bf16.msra.mxu0 0
    %890 = vmatprep.subr.bf16.mxu0 0
    %891 = vmatpush1.bf16.msra.mxu0 0
    %892 = vmatprep.subr.bf16.mxu0 0
    %893 = vmatpush1.bf16.msra.mxu0 0
    %894 = vmatprep.subr.bf16.mxu0 0
    %895 = vmatpush1.bf16.msra.mxu0 0
    %896 = vmatprep.mubr.bf16.mxu0 0
    %897 = vmatmul.mubr.bf16.gmra.mrb[0].mxu0 %v863
    %v898 = vpop.f32.mrb[0].mxu0
    %v899 = vadd.f32 0.0, %v898
    %v900 = vpop.f32.mrb[0].mxu0
    %v901 = vadd.f32 0.0, %v900
    %v902 = vpop.f32.mrb[0].mxu0
    %v903 = vpop.f32.mrb[0].mxu0
    %904 = vdwg.mxu0
    %905 = vmatprep.subr.bf16.mxu0 %v363
    %906 = vmatpush1.bf16.msra.mxu0 %v362
    %907 = vmatprep.subr.bf16.mxu0 %v367
    %908 = vmatpush1.bf16.msra.mxu0 %v366
    %909 = vmatprep.subr.bf16.mxu0 %v371
    %910 = vmatpush1.bf16.msra.mxu0 %v370
    %911 = vmatprep.subr.bf16.mxu0 %v375
    %912 = vmatpush1.bf16.msra.mxu0 %v374
    %913 = vmatprep.subr.bf16.mxu0 %v379
    %914 = vmatpush1.bf16.msra.mxu0 %v378
    %915 = vmatprep.subr.bf16.mxu0 %v383
    %916 = vmatpush1.bf16.msra.mxu0 %v382
    %917 = vmatprep.subr.bf16.mxu0 %v387
    %918 = vmatpush1.bf16.msra.mxu0 %v386
    %919 = vmatprep.subr.bf16.mxu0 %v391
    %920 = vmatpush1.bf16.msra.mxu0 %v390
    %921 = vmatprep.subr.bf16.mxu0 0
    %922 = vmatpush1.bf16.msra.mxu0 0
    %923 = vmatprep.subr.bf16.mxu0 0
    %924 = vmatpush1.bf16.msra.mxu0 0
    %925 = vmatprep.subr.bf16.mxu0 0
    %926 = vmatpush1.bf16.msra.mxu0 0
    %927 = vmatprep.subr.bf16.mxu0 0
    %928 = vmatpush1.bf16.msra.mxu0 0
    %929 = vmatprep.subr.bf16.mxu0 0
    %930 = vmatpush1.bf16.msra.mxu0 0
    %931 = vmatprep.subr.bf16.mxu0 0
    %932 = vmatpush1.bf16.msra.mxu0 0
    %933 = vmatprep.subr.bf16.mxu0 0
    %934 = vmatpush1.bf16.msra.mxu0 0
    %935 = vmatprep.subr.bf16.mxu0 0
    %936 = vmatpush1.bf16.msra.mxu0 0
    %937 = vmatprep.mubr.bf16.mxu0 0
    %938 = vmatmul.mubr.bf16.gmra.mrb[0].mxu0 %v863
    %v939 = vpop.f32.mrb[0].mxu0
    %v940 = vadd.f32 0.0, %v939
    %v941 = vpop.f32.mrb[0].mxu0
    %v942 = vadd.f32 0.0, %v941
    %v943 = vpop.f32.mrb[0].mxu0
    %v944 = vpop.f32.mrb[0].mxu0
    %945 = vdwg.mxu0
    %v946 = vadd.f32 %v859, %v899
    %v947 = vadd.f32 %v860, %v901
    %v948 = vadd.f32 %v861, %v940
    %v949 = vadd.f32 %v862, %v942
    %v950 = vmul.f32 %v946, 0.5
    %v951 = vtanh.pop %v950
    %v952 = vmul.f32 %v951, 0.5
    %v953 = vadd.f32 %v952, 0.5
    %v954 = vmul.f32 %v947, 0.5
    %v955 = vtanh.pop %v954
    %v956 = vmul.f32 %v955, 0.5
    %v957 = vadd.f32 %v956, 0.5
    %v958 = vtanh.pop %v948
    %v959 = vmul.f32 %v949, 0.5
    %v960 = vtanh.pop %v959
    %v961 = vmul.f32 %v960, 0.5
    %v962 = vadd.f32 %v961, 0.5
    %v963 = vmul.f32 %v957, %v855
    %v964 = vmul.f32 %v953, %v958
    %v965 = vadd.f32 %v963, %v964
    %v966 = vtanh.pop %v965
    %v967 = vmul.f32 %v962, %v966
    %s968 = scalar_lea.vmem [#allocation2], 160
    %v969 = vld [vmem:[%s968] sm:$0xff]
    %v970 = vld [vmem:[%s968 + $0x8] sm:$0xff]
    %v971 = vld [vmem:[%s968 + $0x10] sm:$0xff]
    %v972 = vld [vmem:[%s968 + $0x18] sm:$0xff]
    %v973 = vpack.c.bf16 %v967, %v967
    %974 = vmatprep.subr.bf16.mxu0 %v361
    %975 = vmatpush1.bf16.msra.mxu0 %v360
    %976 = vmatprep.subr.bf16.mxu0 %v365
    %977 = vmatpush1.bf16.msra.mxu0 %v364
    %978 = vmatprep.subr.bf16.mxu0 %v369
    %979 = vmatpush1.bf16.msra.mxu0 %v368
    %980 = vmatprep.subr.bf16.mxu0 %v373
    %981 = vmatpush1.bf16.msra.mxu0 %v372
    %982 = vmatprep.subr.bf16.mxu0 %v377
    %983 = vmatpush1.bf16.msra.mxu0 %v376
    %984 = vmatprep.subr.bf16.mxu0 %v381
    %985 = vmatpush1.bf16.msra.mxu0 %v380
    %986 = vmatprep.subr.bf16.mxu0 %v385
    %987 = vmatpush1.bf16.msra.mxu0 %v384
    %988 = vmatprep.subr.bf16.mxu0 %v389
    %989 = vmatpush1.bf16.msra.mxu0 %v388
    %990 = vmatprep.subr.bf16.mxu0 0
    %991 = vmatpush1.bf16.msra.mxu0 0
    %992 = vmatprep.subr.bf16.mxu0 0
    %993 = vmatpush1.bf16.msra.mxu0 0
    %994 = vmatprep.subr.bf16.mxu0 0
    %995 = vmatpush1.bf16.msra.mxu0 0
    %996 = vmatprep.subr.bf16.mxu0 0
    %997 = vmatpush1.bf16.msra.mxu0 0
    %998 = vmatprep.subr.bf16.mxu0 0
    %999 = vmatpush1.bf16.msra.mxu0 0
    %1000 = vmatprep.subr.bf16.mxu0 0
    %1001 = vmatpush1.bf16.msra.mxu0 0
    %1002 = vmatprep.subr.bf16.mxu0 0
    %1003 = vmatpush1.bf16.msra.mxu0 0
    %1004 = vmatprep.subr.bf16.mxu0 0
    %1005 = vmatpush1.bf16.msra.mxu0 0
    %1006 = vmatprep.mubr.bf16.mxu0 0
    %1007 = vmatmul.mubr.bf16.gmra.mrb[0].mxu0 %v973
    %v1008 = vpop.f32.mrb[0].mxu0
    %v1009 = vadd.f32 0.0, %v1008
    %v1010 = vpop.f32.mrb[0].mxu0
    %v1011 = vadd.f32 0.0, %v1010
    %v1012 = vpop.f32.mrb[0].mxu0
    %v1013 = vpop.f32.mrb[0].mxu0
    %1014 = vdwg.mxu0
    %1015 = vmatprep.subr.bf16.mxu0 %v363
    %1016 = vmatpush1.bf16.msra.mxu0 %v362
    %1017 = vmatprep.subr.bf16.mxu0 %v367
    %1018 = vmatpush1.bf16.msra.mxu0 %v366
    %1019 = vmatprep.subr.bf16.mxu0 %v371
    %1020 = vmatpush1.bf16.msra.mxu0 %v370
    %1021 = vmatprep.subr.bf16.mxu0 %v375
    %1022 = vmatpush1.bf16.msra.mxu0 %v374
    %1023 = vmatprep.subr.bf16.mxu0 %v379
    %1024 = vmatpush1.bf16.msra.mxu0 %v378
    %1025 = vmatprep.subr.bf16.mxu0 %v383
    %1026 = vmatpush1.bf16.msra.mxu0 %v382
    %1027 = vmatprep.subr.bf16.mxu0 %v387
    %1028 = vmatpush1.bf16.msra.mxu0 %v386
    %1029 = vmatprep.subr.bf16.mxu0 %v391
    %1030 = vmatpush1.bf16.msra.mxu0 %v390
    %1031 = vmatprep.subr.bf16.mxu0 0
    %1032 = vmatpush1.bf16.msra.mxu0 0
    %1033 = vmatprep.subr.bf16.mxu0 0
    %1034 = vmatpush1.bf16.msra.mxu0 0
    %1035 = vmatprep.subr.bf16.mxu0 0
    %1036 = vmatpush1.bf16.msra.mxu0 0
    %1037 = vmatprep.subr.bf16.mxu0 0
    %1038 = vmatpush1.bf16.msra.mxu0 0
    %1039 = vmatprep.subr.bf16.mxu0 0
    %1040 = vmatpush1.bf16.msra.mxu0 0
    %1041 = vmatprep.subr.bf16.mxu0 0
    %1042 = vmatpush1.bf16.msra.mxu0 0
    %1043 = vmatprep.subr.bf16.mxu0 0
    %1044 = vmatpush1.bf16.msra.mxu0 0
    %1045 = vmatprep.subr.bf16.mxu0 0
    %1046 = vmatpush1.bf16.msra.mxu0 0
    %1047 = vmatprep.mubr.bf16.mxu0 0
    %1048 = vmatmul.mubr.bf16.gmra.mrb[0].mxu0 %v973
    %v1049 = vpop.f32.mrb[0].mxu0
    %v1050 = vadd.f32 0.0, %v1049
    %v1051 = vpop.f32.mrb[0].mxu0
    %v1052 = vadd.f32 0.0, %v1051
    %v1053 = vpop.f32.mrb[0].mxu0
    %v1054 = vpop.f32.mrb[0].mxu0
    %1055 = vdwg.mxu0
    %v1056 = vadd.f32 %v969, %v1009
    %v1057 = vadd.f32 %v970, %v1011
    %v1058 = vadd.f32 %v971, %v1050
    %v1059 = vadd.f32 %v972, %v1052
    %v1060 = vmul.f32 %v1056, 0.5
    %v1061 = vtanh.pop %v1060
    %v1062 = vmul.f32 %v1061, 0.5
    %v1063 = vadd.f32 %v1062, 0.5
    %v1064 = vmul.f32 %v1057, 0.5
    %v1065 = vtanh.pop %v1064
    %v1066 = vmul.f32 %v1065, 0.5
    %v1067 = vadd.f32 %v1066, 0.5
    %v1068 = vtanh.pop %v1058
    %v1069 = vmul.f32 %v1059, 0.5
    %v1070 = vtanh.pop %v1069
    %v1071 = vmul.f32 %v1070, 0.5
    %v1072 = vadd.f32 %v1071, 0.5
    %v1073 = vmul.f32 %v1067, %v965
    %v1074 = vmul.f32 %v1063, %v1068
    %v1075 = vadd.f32 %v1073, %v1074
    %v1076 = vtanh.pop %v1075
    %v1077 = vmul.f32 %v1072, %v1076
    %s1078 = scalar_lea.vmem [#allocation2], 192
    %v1079 = vld [vmem:[%s1078] sm:$0xff]
    %v1080 = vld [vmem:[%s1078 + $0x8] sm:$0xff]
    %v1081 = vld [vmem:[%s1078 + $0x10] sm:$0xff]
    %v1082 = vld [vmem:[%s1078 + $0x18] sm:$0xff]
    %v1083 = vpack.c.bf16 %v1077, %v1077
    %1084 = vmatprep.subr.bf16.mxu0 %v361
    %1085 = vmatpush1.bf16.msra.mxu0 %v360
    %1086 = vmatprep.subr.bf16.mxu0 %v365
    %1087 = vmatpush1.bf16.msra.mxu0 %v364
    %1088 = vmatprep.subr.bf16.mxu0 %v369
    %1089 = vmatpush1.bf16.msra.mxu0 %v368
    %1090 = vmatprep.subr.bf16.mxu0 %v373
    %1091 = vmatpush1.bf16.msra.mxu0 %v372
    %1092 = vmatprep.subr.bf16.mxu0 %v377
    %1093 = vmatpush1.bf16.msra.mxu0 %v376
    %1094 = vmatprep.subr.bf16.mxu0 %v381
    %1095 = vmatpush1.bf16.msra.mxu0 %v380
    %1096 = vmatprep.subr.bf16.mxu0 %v385
    %1097 = vmatpush1.bf16.msra.mxu0 %v384
    %1098 = vmatprep.subr.bf16.mxu0 %v389
    %1099 = vmatpush1.bf16.msra.mxu0 %v388
    %1100 = vmatprep.subr.bf16.mxu0 0
    %1101 = vmatpush1.bf16.msra.mxu0 0
    %1102 = vmatprep.subr.bf16.mxu0 0
    %1103 = vmatpush1.bf16.msra.mxu0 0
    %1104 = vmatprep.subr.bf16.mxu0 0
    %1105 = vmatpush1.bf16.msra.mxu0 0
    %1106 = vmatprep.subr.bf16.mxu0 0
    %1107 = vmatpush1.bf16.msra.mxu0 0
    %1108 = vmatprep.subr.bf16.mxu0 0
    %1109 = vmatpush1.bf16.msra.mxu0 0
    %1110 = vmatprep.subr.bf16.mxu0 0
    %1111 = vmatpush1.bf16.msra.mxu0 0
    %1112 = vmatprep.subr.bf16.mxu0 0
    %1113 = vmatpush1.bf16.msra.mxu0 0
    %1114 = vmatprep.subr.bf16.mxu0 0
    %1115 = vmatpush1.bf16.msra.mxu0 0
    %1116 = vmatprep.mubr.bf16.mxu0 0
    %1117 = vmatmul.mubr.bf16.gmra.mrb[0].mxu0 %v1083
    %v1118 = vpop.f32.mrb[0].mxu0
    %v1119 = vadd.f32 0.0, %v1118
    %v1120 = vpop.f32.mrb[0].mxu0
    %v1121 = vadd.f32 0.0, %v1120
    %v1122 = vpop.f32.mrb[0].mxu0
    %v1123 = vpop.f32.mrb[0].mxu0
    %1124 = vdwg.mxu0
    %1125 = vmatprep.subr.bf16.mxu0 %v363
    %1126 = vmatpush1.bf16.msra.mxu0 %v362
    %1127 = vmatprep.subr.bf16.mxu0 %v367
    %1128 = vmatpush1.bf16.msra.mxu0 %v366
    %1129 = vmatprep.subr.bf16.mxu0 %v371
    %1130 = vmatpush1.bf16.msra.mxu0 %v370
    %1131 = vmatprep.subr.bf16.mxu0 %v375
    %1132 = vmatpush1.bf16.msra.mxu0 %v374
    %1133 = vmatprep.subr.bf16.mxu0 %v379
    %1134 = vmatpush1.bf16.msra.mxu0 %v378
    %1135 = vmatprep.subr.bf16.mxu0 %v383
    %1136 = vmatpush1.bf16.msra.mxu0 %v382
    %1137 = vmatprep.subr.bf16.mxu0 %v387
    %1138 = vmatpush1.bf16.msra.mxu0 %v386
    %1139 = vmatprep.subr.bf16.mxu0 %v391
    %1140 = vmatpush1.bf16.msra.mxu0 %v390
    %1141 = vmatprep.subr.bf16.mxu0 0
    %1142 = vmatpush1.bf16.msra.mxu0 0
    %1143 = vmatprep.subr.bf16.mxu0 0
    %1144 = vmatpush1.bf16.msra.mxu0 0
    %1145 = vmatprep.subr.bf16.mxu0 0
    %1146 = vmatpush1.bf16.msra.mxu0 0
    %1147 = vmatprep.subr.bf16.mxu0 0
    %1148 = vmatpush1.bf16.msra.mxu0 0
    %1149 = vmatprep.subr.bf16.mxu0 0
    %1150 = vmatpush1.bf16.msra.mxu0 0
    %1151 = vmatprep.subr.bf16.mxu0 0
    %1152 = vmatpush1.bf16.msra.mxu0 0
    %1153 = vmatprep.subr.bf16.mxu0 0
    %1154 = vmatpush1.bf16.msra.mxu0 0
    %1155 = vmatprep.subr.bf16.mxu0 0
    %1156 = vmatpush1.bf16.msra.mxu0 0
    %1157 = vmatprep.mubr.bf16.mxu0 0
    %1158 = vmatmul.mubr.bf16.gmra.mrb[0].mxu0 %v1083
    %v1159 = vpop.f32.mrb[0].mxu0
    %v1160 = vadd.f32 0.0, %v1159
    %v1161 = vpop.f32.mrb[0].mxu0
    %v1162 = vadd.f32 0.0, %v1161
    %v1163 = vpop.f32.mrb[0].mxu0
    %v1164 = vpop.f32.mrb[0].mxu0
    %1165 = vdwg.mxu0
    %v1166 = vadd.f32 %v1079, %v1119
    %v1167 = vadd.f32 %v1080, %v1121
    %v1168 = vadd.f32 %v1081, %v1160
    %v1169 = vadd.f32 %v1082, %v1162
    %v1170 = vmul.f32 %v1166, 0.5
    %v1171 = vtanh.pop %v1170
    %v1172 = vmul.f32 %v1171, 0.5
    %v1173 = vadd.f32 %v1172, 0.5
    %v1174 = vmul.f32 %v1167, 0.5
    %v1175 = vtanh.pop %v1174
    %v1176 = vmul.f32 %v1175, 0.5
    %v1177 = vadd.f32 %v1176, 0.5
    %v1178 = vtanh.pop %v1168
    %v1179 = vmul.f32 %v1169, 0.5
    %v1180 = vtanh.pop %v1179
    %v1181 = vmul.f32 %v1180, 0.5
    %v1182 = vadd.f32 %v1181, 0.5
    %v1183 = vmul.f32 %v1177, %v1075
    %v1184 = vmul.f32 %v1173, %v1178
    %v1185 = vadd.f32 %v1183, %v1184
    %v1186 = vtanh.pop %v1185
    %v1187 = vmul.f32 %v1182, %v1186
    %s1188 = scalar_lea.vmem [#allocation2], 224
    %v1189 = vld [vmem:[%s1188] sm:$0xff]
    %v1190 = vld [vmem:[%s1188 + $0x8] sm:$0xff]
    %v1191 = vld [vmem:[%s1188 + $0x10] sm:$0xff]
    %v1192 = vld [vmem:[%s1188 + $0x18] sm:$0xff]
    %v1193 = vpack.c.bf16 %v1187, %v1187
    %1194 = vmatprep.subr.bf16.mxu0 %v361
    %1195 = vmatpush1.bf16.msra.mxu0 %v360
    %1196 = vmatprep.subr.bf16.mxu0 %v365
    %1197 = vmatpush1.bf16.msra.mxu0 %v364
    %1198 = vmatprep.subr.bf16.mxu0 %v369
    %1199 = vmatpush1.bf16.msra.mxu0 %v368
    %1200 = vmatprep.subr.bf16.mxu0 %v373
    %1201 = vmatpush1.bf16.msra.mxu0 %v372
    %1202 = vmatprep.subr.bf16.mxu0 %v377
    %1203 = vmatpush1.bf16.msra.mxu0 %v376
    %1204 = vmatprep.subr.bf16.mxu0 %v381
    %1205 = vmatpush1.bf16.msra.mxu0 %v380
    %1206 = vmatprep.subr.bf16.mxu0 %v385
    %1207 = vmatpush1.bf16.msra.mxu0 %v384
    %1208 = vmatprep.subr.bf16.mxu0 %v389
    %1209 = vmatpush1.bf16.msra.mxu0 %v388
    %1210 = vmatprep.subr.bf16.mxu0 0
    %1211 = vmatpush1.bf16.msra.mxu0 0
    %1212 = vmatprep.subr.bf16.mxu0 0
    %1213 = vmatpush1.bf16.msra.mxu0 0
    %1214 = vmatprep.subr.bf16.mxu0 0
    %1215 = vmatpush1.bf16.msra.mxu0 0
    %1216 = vmatprep.subr.bf16.mxu0 0
    %1217 = vmatpush1.bf16.msra.mxu0 0
    %1218 = vmatprep.subr.bf16.mxu0 0
    %1219 = vmatpush1.bf16.msra.mxu0 0
    %1220 = vmatprep.subr.bf16.mxu0 0
    %1221 = vmatpush1.bf16.msra.mxu0 0
    %1222 = vmatprep.subr.bf16.mxu0 0
    %1223 = vmatpush1.bf16.msra.mxu0 0
    %1224 = vmatprep.subr.bf16.mxu0 0
    %1225 = vmatpush1.bf16.msra.mxu0 0
    %1226 = vmatprep.mubr.bf16.mxu0 0
    %1227 = vmatmul.mubr.bf16.gmra.mrb[0].mxu0 %v1193
    %v1228 = vpop.f32.mrb[0].mxu0
    %v1229 = vadd.f32 0.0, %v1228
    %v1230 = vpop.f32.mrb[0].mxu0
    %v1231 = vadd.f32 0.0, %v1230
    %v1232 = vpop.f32.mrb[0].mxu0
    %v1233 = vpop.f32.mrb[0].mxu0
    %1234 = vdwg.mxu0
    %1235 = vmatprep.subr.bf16.mxu0 %v363
    %1236 = vmatpush1.bf16.msra.mxu0 %v362
    %1237 = vmatprep.subr.bf16.mxu0 %v367
    %1238 = vmatpush1.bf16.msra.mxu0 %v366
    %1239 = vmatprep.subr.bf16.mxu0 %v371
    %1240 = vmatpush1.bf16.msra.mxu0 %v370
    %1241 = vmatprep.subr.bf16.mxu0 %v375
    %1242 = vmatpush1.bf16.msra.mxu0 %v374
    %1243 = vmatprep.subr.bf16.mxu0 %v379
    %1244 = vmatpush1.bf16.msra.mxu0 %v378
    %1245 = vmatprep.subr.bf16.mxu0 %v383
    %1246 = vmatpush1.bf16.msra.mxu0 %v382
    %1247 = vmatprep.subr.bf16.mxu0 %v387
    %1248 = vmatpush1.bf16.msra.mxu0 %v386
    %1249 = vmatprep.subr.bf16.mxu0 %v391
    %1250 = vmatpush1.bf16.msra.mxu0 %v390
    %1251 = vmatprep.subr.bf16.mxu0 0
    %1252 = vmatpush1.bf16.msra.mxu0 0
    %1253 = vmatprep.subr.bf16.mxu0 0
    %1254 = vmatpush1.bf16.msra.mxu0 0
    %1255 = vmatprep.subr.bf16.mxu0 0
    %1256 = vmatpush1.bf16.msra.mxu0 0
    %1257 = vmatprep.subr.bf16.mxu0 0
    %1258 = vmatpush1.bf16.msra.mxu0 0
    %1259 = vmatprep.subr.bf16.mxu0 0
    %1260 = vmatpush1.bf16.msra.mxu0 0
    %1261 = vmatprep.subr.bf16.mxu0 0
    %1262 = vmatpush1.bf16.msra.mxu0 0
    %1263 = vmatprep.subr.bf16.mxu0 0
    %1264 = vmatpush1.bf16.msra.mxu0 0
    %1265 = vmatprep.subr.bf16.mxu0 0
    %1266 = vmatpush1.bf16.msra.mxu0 0
    %1267 = vmatprep.mubr.bf16.mxu0 0
    %1268 = vmatmul.mubr.bf16.gmra.mrb[0].mxu0 %v1193
    %v1269 = vpop.f32.mrb[0].mxu0
    %v1270 = vadd.f32 0.0, %v1269
    %v1271 = vpop.f32.mrb[0].mxu0
    %v1272 = vadd.f32 0.0, %v1271
    %v1273 = vpop.f32.mrb[0].mxu0
    %v1274 = vpop.f32.mrb[0].mxu0
    %1275 = vdwg.mxu0
    %v1276 = vadd.f32 %v1189, %v1229
    %v1277 = vadd.f32 %v1190, %v1231
    %v1278 = vadd.f32 %v1191, %v1270
    %v1279 = vadd.f32 %v1192, %v1272
    %v1280 = vmul.f32 %v1276, 0.5
    %v1281 = vtanh.pop %v1280
    %v1282 = vmul.f32 %v1281, 0.5
    %v1283 = vadd.f32 %v1282, 0.5
    %v1284 = vmul.f32 %v1277, 0.5
    %v1285 = vtanh.pop %v1284
    %v1286 = vmul.f32 %v1285, 0.5
    %v1287 = vadd.f32 %v1286, 0.5
    %v1288 = vtanh.pop %v1278
    %v1289 = vmul.f32 %v1279, 0.5
    %v1290 = vtanh.pop %v1289
    %v1291 = vmul.f32 %v1290, 0.5
    %v1292 = vadd.f32 %v1291, 0.5
    %v1293 = vmul.f32 %v1287, %v1185
    %v1294 = vmul.f32 %v1283, %v1288
    %v1295 = vadd.f32 %v1293, %v1294
    %v1296 = vtanh.pop %v1295
    %v1297 = vmul.f32 %v1292, %v1296
    %v1298 = vld [vmem:[%s4] sm:$0x1]
    %v1300 = vlaneseq
    %v1301 = vshrl.u32 %v1300, 7
    %v1302 = vsub.s32 0, %v1301
    %v1303 = vrot.slane %v1298, %v1302
    %v1305 = vmul.f32 %v1297, %v1303
    %1306 = vadd.xlane.f32.xlu0 %v1305
    %v1307 = vpop.xlane.xlu0 %1306
    %v1308 = vld [vmem:[#allocation3] sm:$0x1]
    %v1310 = vlaneseq
    %v1311 = vshrl.u32 %v1310, 7
    %v1312 = vsub.s32 0, %v1311
    %v1313 = vrot.slane %v1308, %v1312
    %v1315 = vadd.f32 %v1307, %v1313
    %vm1316 = vcmask 7168
    %1317 = vst.msk [vmem:[%s6] sm:$0xff] %vm1316, %v1315
    // Predicated region
    $region30: #{lstm_forward.1} parent=1 // pred_check
      _
    $region31: #{lstm_forward.1} parent=1 // pred_check_branch
      %1319 = sbr.rel (0) target = $region33
    $region32: #{lstm_forward.1} parent=1 // pred_region
      _
    $region33: #{lstm_forward.1} parent=1 // pred_fallthru
      _
    // Predicated region
    $region34: #{lstm_forward.1} parent=1 // pred_check
      _
    $region35: #{lstm_forward.1} parent=1 // pred_check_branch
      %1321 = sbr.rel (0) target = $region37
    $region36: #{lstm_forward.1} parent=1 // pred_region
      _
    $region37: #{lstm_forward.1} parent=1 // pred_fallthru
      _
    %1322 = vsyncpa [#allocation5], 1

</llo_original>
